<compile_context>
chip_gen: v7x
topology: tpu7x:2x2x1
jax: 0.10.0
libtpu: 0.0.40
codegen_flags: <defaults>
</compile_context>

<pallas_src>
import functools

import jax
import jax.numpy as jnp
from jax.experimental import pallas as pl
from jax.experimental.pallas import tpu as pltpu


def _round_up(x, m):
    return (x + m - 1) // m * m


def _decoder_lstm_kernel(x_ref, h0_ref, c0_ref, *rest, num_layers, hidden_size,
                         chunk_steps, num_chunks, batch_pad):
    """Fused multi-layer LSTM forward — one kernel invocation, no grid.

    rest = (wihbd_0, whh_0, bias_0, ..., wihbd_{L-1}, whh_{L-1}, bias_{L-1},
            out_ref, gx_scr[, act_scr])

    Lane-dense slabs (row = chunk*Bp + batch_row, lanes grouped by step-in-chunk s):
      x_ref   : (NC*Bp, TC*I)    lanes [s*I:(s+1)*I]   = x at step chunk*TC+s
      gx_scr  : (NC*Bp, TC*4H)   lanes [s*4H:(s+1)*4H] = input-projected gates
      act_scr : (NC*Bp, TC*H)    inter-layer hidden states (layers 0..L-2 only)
      out_ref : (NC*Bp, TC*H)    last layer's hidden states (written directly)
    """
    L, H = num_layers, hidden_size
    TC, NC, Bp = chunk_steps, num_chunks, batch_pad
    G = 4 * H

    out_ref = rest[3 * L]
    gx_scr = rest[3 * L + 1]
    act_scr = rest[3 * L + 2] if L > 1 else None

    for l in range(L):
        wih_bd = rest[3 * l][...]        # (TC*F_l, TC*4H) block-diagonal W_ih^T
        whh = rest[3 * l + 1][...]       # (H, 4H)
        bias = rest[3 * l + 2][...]      # (1, TC*4H)

        # Layer input slab: raw x for layer 0, previous layer's hidden states otherwise.
        layer_in = (x_ref[...] if l == 0 else act_scr[...]).astype(jnp.float32)

        # Hoisted input projection for ALL time steps: one MXU matmul per layer,
        # materialized into an explicit VMEM scratch (reused across layers).
        gx_scr[...] = (
            jnp.dot(layer_in, wih_bd, preferred_element_type=jnp.float32) + bias)

        # Last layer streams its hidden states straight into the kernel output.
        dst = out_ref if l == L - 1 else act_scr

        h_init = h0_ref[l].astype(jnp.float32)   # (Bp, H)
        c_init = c0_ref[l].astype(jnp.float32)   # (Bp, H)

        def chunk_body(chunk, carry, whh=whh, dst=dst):
            h, c = carry
            row0 = pl.multiple_of(chunk * Bp, 8)
            gx_chunk = gx_scr[pl.ds(row0, Bp), :]            # (Bp, TC*4H)
            h_steps = []
            for s in range(TC):                              # partial unroll (TC steps)
                gates = gx_chunk[:, s * G:(s + 1) * G] + jnp.dot(
                    h, whh, preferred_element_type=jnp.float32)      # (Bp, 4H)
                # Full-width nonlinearities over the whole 4H gate tile (EUP slot).
                sg = jax.nn.sigmoid(gates)
                tg = jnp.tanh(gates)
                i_g = sg[:, 0 * H:1 * H]
                f_g = sg[:, 1 * H:2 * H]
                g_g = tg[:, 2 * H:3 * H]
                o_g = sg[:, 3 * H:4 * H]
                c = f_g * c + i_g * g_g
                h = o_g * jnp.tanh(c)
                h_steps.append(h)
            # One lane-dense (Bp, TC*H) store per chunk instead of TC masked stores.
            dst[pl.ds(row0, Bp), :] = jnp.concatenate(
                h_steps, axis=1).astype(dst.dtype)
            return h, c

        # fori_loop over chunks (bounds live ranges); TC-step inner unroll keeps
        # LLO scheduler visibility on the serial recurrence.
        _ = jax.lax.fori_loop(0, NC, chunk_body, (h_init, c_init))

        # TODO(synk): inter-layer dropout (p=0.2) is train-only in PyTorch; eval
        # semantics (no dropout) implemented here.

    # TODO(synk): W_hh is loop-invariant; relying on Mosaic to hoist the MXU RHS push
    # out of the recurrence (explicit matmul_push_rhs residency and the cross-layer
    # block-diagonal wavefront schedule are not implemented).


def decoder_forward(x, hidden_encoder, cell_encoder, params):
    """Decoder.forward:
       x:              (B, T, linear_output_size)  batch-first (PyTorch layout)
       hidden_encoder: (num_layers, B, H)
       cell_encoder:   (num_layers, B, H)
       returns lstm_output: (B, T, H)
    """
    B, T, I = x.shape
    L = hidden_encoder.shape[0]
    H = hidden_encoder.shape[-1]

    Bp = _round_up(B, 8)                              # sublane-aligned batch
    TC = 1 if H >= 128 else max(1, -(-128 // H))      # steps per chunk: TC*H >= 128
    Tp = _round_up(T, TC)                             # padded time steps (tail discarded)
    NC = Tp // TC

    # x -> lane-dense chunked slab (NC*Bp, TC*I).
    x_tm = jnp.transpose(x, (1, 0, 2))                                 # (T, B, I)
    x_tm = jnp.pad(x_tm, ((0, Tp - T), (0, Bp - B), (0, 0)))           # (Tp, Bp, I)
    x2d = x_tm.reshape(NC, TC, Bp, I).transpose(0, 2, 1, 3).reshape(NC * Bp, TC * I)

    h0 = jnp.pad(hidden_encoder, ((0, 0), (0, Bp - B), (0, 0)))        # (L, Bp, H)
    c0 = jnp.pad(cell_encoder, ((0, 0), (0, Bp - B), (0, 0)))          # (L, Bp, H)

    weight_args = []
    for l in range(L):
        w_ih, w_hh, b_ih, b_hh = params[l]         # (4H,F), (4H,H), (4H,), (4H,)
        wih_t = jnp.transpose(w_ih)                # (F, 4H)
        # Block-diagonal replication so the hoisted projection maps the chunked
        # lane-dense input slab directly to a chunked lane-dense gate slab.
        wih_bd = jnp.kron(jnp.eye(TC, dtype=wih_t.dtype), wih_t)       # (TC*F, TC*4H)
        whh_t = jnp.transpose(w_hh)                # (H, 4H)
        bias = jnp.tile((b_ih + b_hh).reshape(1, 4 * H), (1, TC))      # (1, TC*4H)
        weight_args += [wih_bd, whh_t, bias]

    kernel = functools.partial(
        _decoder_lstm_kernel, num_layers=L, hidden_size=H,
        chunk_steps=TC, num_chunks=NC, batch_pad=Bp)

    vmem_spec = pl.BlockSpec(memory_space=pltpu.MemorySpace.VMEM)
    n_in = 3 + 3 * L
    out_dtype = x.dtype

    scratch_shapes = [pltpu.VMEM((NC * Bp, TC * 4 * H), jnp.float32)]  # gx
    if L > 1:
        scratch_shapes.append(pltpu.VMEM((NC * Bp, TC * H), jnp.float32))  # act

    # Explicit VMEM budget (scoped default is 16/32 MiB depending on generation).
    io_bytes = sum(int(a.size) * a.dtype.itemsize for a in (x2d, h0, c0, *weight_args))
    io_bytes += NC * Bp * TC * H * jnp.dtype(out_dtype).itemsize
    scr_bytes = NC * Bp * TC * 4 * H * 4 + (NC * Bp * TC * H * 4 if L > 1 else 0)
    vmem_limit = int(min(96 << 20, max(8 << 20, 2 * (io_bytes + scr_bytes))))

    # TODO(synk): for long sequences, tile the time axis (grid / emit_pipeline)
    # instead of whole-sequence VMEM residency, and split the batch over a
    # 'parallel' grid axis to use both v7x TensorCores.
    out2d = pl.pallas_call(
        kernel,
        out_shape=jax.ShapeDtypeStruct((NC * Bp, TC * H), out_dtype),
        in_specs=[vmem_spec] * n_in,
        out_specs=vmem_spec,
        scratch_shapes=scratch_shapes,
        compiler_params=pltpu.CompilerParams(vmem_limit_bytes=vmem_limit),
    )(x2d, h0, c0, *weight_args)

    # Undo the lane-dense chunked layout: (NC*Bp, TC*H) -> (B, T, H).
    out = out2d.reshape(NC, Bp, TC, H).transpose(1, 0, 2, 3).reshape(Bp, Tp, H)
    return out[:B, :T, :]


def init_lstm_params(key, input_size, hidden_size, num_layers, dtype=jnp.float32):
    """Deterministic PyTorch-style init: U(-1/sqrt(H), 1/sqrt(H))."""
    bound = 1.0 / float(hidden_size) ** 0.5
    params = []
    for l in range(num_layers):
        in_sz = input_size if l == 0 else hidden_size
        key, k1, k2, k3, k4 = jax.random.split(key, 5)
        w_ih = jax.random.uniform(k1, (4 * hidden_size, in_sz), dtype, -bound, bound)
        w_hh = jax.random.uniform(k2, (4 * hidden_size, hidden_size), dtype, -bound, bound)
        b_ih = jax.random.uniform(k3, (4 * hidden_size,), dtype, -bound, bound)
        b_hh = jax.random.uniform(k4, (4 * hidden_size,), dtype, -bound, bound)
        params.append((w_ih, w_hh, b_ih, b_hh))
    return params


def _reference_lstm(x, h0, c0, params):
    """Pure-JAX reference (same math, lax.scan) for a sanity check."""
    def layer(x_tm, wp, h_init, c_init):
        w_ih, w_hh, b_ih, b_hh = wp
        H = h_init.shape[-1]

        def step(carry, x_t):
            h, c = carry
            g = x_t @ w_ih.T + h @ w_hh.T + b_ih + b_hh
            i = jax.nn.sigmoid(g[:, 0 * H:1 * H])
            f = jax.nn.sigmoid(g[:, 1 * H:2 * H])
            gg = jnp.tanh(g[:, 2 * H:3 * H])
            o = jax.nn.sigmoid(g[:, 3 * H:4 * H])
            c = f * c + i * gg
            h = o * jnp.tanh(c)
            return (h, c), h

        _, ys = jax.lax.scan(step, (h_init, c_init), x_tm)
        return ys

    x_tm = jnp.transpose(x, (1, 0, 2))
    for l, wp in enumerate(params):
        x_tm = layer(x_tm, wp, h0[l], c0[l])
    return jnp.transpose(x_tm, (1, 0, 2))


if __name__ == "__main__":
    # Small shapes consistent with the module's forward:
    #   linear_output_size (LSTM input size) = 32, hidden = 32, layers = 2
    B, T = 2, 8
    INPUT_SIZE = 32     # linear_output_size
    HIDDEN = 32         # lstm_hidden_size
    NUM_LAYERS = 2      # lstm_num_layers

    key = jax.random.PRNGKey(0)
    kx, kh, kc, kp = jax.random.split(key, 4)

    x = jax.random.normal(kx, (B, T, INPUT_SIZE), jnp.float32)
    hidden_encoder = jax.random.normal(kh, (NUM_LAYERS, B, HIDDEN), jnp.float32)
    cell_encoder = jax.random.normal(kc, (NUM_LAYERS, B, HIDDEN), jnp.float32)
    params = init_lstm_params(kp, INPUT_SIZE, HIDDEN, NUM_LAYERS)

    fwd = jax.jit(decoder_forward)
    out = fwd(x, hidden_encoder, cell_encoder, params)
    out = jax.block_until_ready(out)

    ref = _reference_lstm(x, hidden_encoder, cell_encoder, params)
    assert out.shape == (B, T, HIDDEN)
    assert jnp.allclose(out, ref, atol=1e-3, rtol=1e-3), (
        "mismatch vs reference: max abs err = %g"
        % float(jnp.max(jnp.abs(out - ref))))

    print("KERNEL_OK")
</pallas_src>

<mosaic_0001>
module attributes {stable_mosaic.version = 11 : i64} {
  func.func @_decoder_lstm_kernel(%arg0: memref<16x128xf32, #tpu.memory_space<vmem>>, %arg1: memref<2x8x32xf32, #tpu.memory_space<vmem>>, %arg2: memref<2x8x32xf32, #tpu.memory_space<vmem>>, %arg3: memref<128x512xf32, #tpu.memory_space<vmem>>, %arg4: memref<32x128xf32, #tpu.memory_space<vmem>>, %arg5: memref<1x512xf32, #tpu.memory_space<vmem>>, %arg6: memref<128x512xf32, #tpu.memory_space<vmem>>, %arg7: memref<32x128xf32, #tpu.memory_space<vmem>>, %arg8: memref<1x512xf32, #tpu.memory_space<vmem>>, %arg9: memref<16x128xf32, #tpu.memory_space<vmem>>, %arg10: memref<16x512xf32, #tpu.memory_space<vmem>>, %arg11: memref<16x128xf32, #tpu.memory_space<vmem>>) attributes {dimension_semantics = [], scalar_prefetch = 0 : i64, scratch_operands = 2 : i64, tpu.core_type = #tpu.core_type<tc>} {
    %c0 = arith.constant 0 : index
    %c0_0 = arith.constant 0 : index
    %0 = vector.load %arg3[%c0, %c0_0] : memref<128x512xf32, #tpu.memory_space<vmem>>, vector<128x512xf32>
    %c0_1 = arith.constant 0 : index
    %c0_2 = arith.constant 0 : index
    %1 = vector.load %arg4[%c0_1, %c0_2] : memref<32x128xf32, #tpu.memory_space<vmem>>, vector<32x128xf32>
    %c0_3 = arith.constant 0 : index
    %c0_4 = arith.constant 0 : index
    %2 = vector.load %arg5[%c0_3, %c0_4] : memref<1x512xf32, #tpu.memory_space<vmem>>, vector<1x512xf32>
    %c0_5 = arith.constant 0 : index
    %c0_6 = arith.constant 0 : index
    %3 = vector.load %arg0[%c0_5, %c0_6] : memref<16x128xf32, #tpu.memory_space<vmem>>, vector<16x128xf32>
    %cst = arith.constant dense<0.000000e+00> : vector<16x512xf32>
    %4 = tpu.matmul %3, %0, %cst {dimension_numbers = #tpu.dot_dimension_numbers<[1], [0], [0], [1], [0, 0, 1, 1], [], []>} : vector<16x128xf32>, vector<128x512xf32>, vector<16x512xf32> -> vector<16x512xf32>
    %5 = vector.broadcast %2 : vector<1x512xf32> to vector<16x512xf32>
    %6 = arith.addf %4, %5 : vector<16x512xf32>
    %c0_7 = arith.constant 0 : index
    %c0_8 = arith.constant 0 : index
    %7 = vector.load %arg10[%c0_7, %c0_8] : memref<16x512xf32, #tpu.memory_space<vmem>>, vector<16x512xf32>
    tpu.vector_store %arg10[%c0_7, %c0_8], %6 {strides = array<i32>} : memref<16x512xf32, #tpu.memory_space<vmem>>, vector<16x512xf32>,
    %c0_9 = arith.constant 0 : index
    %c0_10 = arith.constant 0 : index
    %c0_11 = arith.constant 0 : index
    %8 = vector.load %arg1[%c0_9, %c0_10, %c0_11] : memref<2x8x32xf32, #tpu.memory_space<vmem>>, vector<1x8x32xf32>
    %9 = vector.shape_cast %8 : vector<1x8x32xf32> to vector<8x32xf32>
    %c0_12 = arith.constant 0 : index
    %c0_13 = arith.constant 0 : index
    %c0_14 = arith.constant 0 : index
    %10 = vector.load %arg2[%c0_12, %c0_13, %c0_14] : memref<2x8x32xf32, #tpu.memory_space<vmem>>, vector<1x8x32xf32>
    %11 = vector.shape_cast %10 : vector<1x8x32xf32> to vector<8x32xf32>
    %c0_i32 = arith.constant 0 : i32
    %c2_i32 = arith.constant 2 : i32
    %12 = arith.addi %c0_i32, %c2_i32 : i32
    %c1_i32 = arith.constant 1 : i32
    %13:2 = scf.for %arg12 = %c0_i32 to %12 step %c1_i32 iter_args(%arg13 = %9, %arg14 = %11) -> (vector<8x32xf32>, vector<8x32xf32>)  : i32 {
      %c8_i32 = arith.constant 8 : i32
      %28 = arith.muli %arg12, %c8_i32 : i32
      %29 = tpu.assume_multiple %28, 8 : i32
      %30 = arith.index_cast %29 : i32 to index
      %c0_36 = arith.constant 0 : index
      %31 = vector.load %arg10[%30, %c0_36] : memref<16x512xf32, #tpu.memory_space<vmem>>, vector<8x512xf32>
      %32 = vector.extract_strided_slice %31 {offsets = [0, 0], sizes = [8, 128], strides = [1, 1]} : vector<8x512xf32> to vector<8x128xf32>
      %cst_37 = arith.constant dense<0.000000e+00> : vector<8x128xf32>
      %33 = tpu.matmul %arg13, %1, %cst_37 {dimension_numbers = #tpu.dot_dimension_numbers<[1], [0], [0], [1], [0, 0, 1, 1], [], []>} : vector<8x32xf32>, vector<32x128xf32>, vector<8x128xf32> -> vector<8x128xf32>
      %34 = arith.addf %32, %33 : vector<8x128xf32>
      %35 = arith.negf %34 : vector<8x128xf32>
      %36 = math.exp %35 : vector<8x128xf32>
      %cst_38 = arith.constant 1.000000e+00 : f32
      %37 = vector.broadcast %cst_38 : f32 to vector<8x128xf32>
      %38 = arith.addf %37, %36 : vector<8x128xf32>
      %39 = arith.divf %37, %38 : vector<8x128xf32>
      %40 = math.tanh %34 : vector<8x128xf32>
      %41 = vector.extract_strided_slice %39 {offsets = [0, 0], sizes = [8, 32], strides = [1, 1]} : vector<8x128xf32> to vector<8x32xf32>
      %42 = vector.extract_strided_slice %39 {offsets = [0, 32], sizes = [8, 32], strides = [1, 1]} : vector<8x128xf32> to vector<8x32xf32>
      %43 = vector.extract_strided_slice %40 {offsets = [0, 64], sizes = [8, 32], strides = [1, 1]} : vector<8x128xf32> to vector<8x32xf32>
      %44 = vector.extract_strided_slice %39 {offsets = [0, 96], sizes = [8, 32], strides = [1, 1]} : vector<8x128xf32> to vector<8x32xf32>
      %45 = arith.mulf %42, %arg14 : vector<8x32xf32>
      %46 = arith.mulf %41, %43 : vector<8x32xf32>
      %47 = arith.addf %45, %46 : vector<8x32xf32>
      %48 = math.tanh %47 : vector<8x32xf32>
      %49 = arith.mulf %44, %48 : vector<8x32xf32>
      %50 = vector.extract_strided_slice %31 {offsets = [0, 128], sizes = [8, 128], strides = [1, 1]} : vector<8x512xf32> to vector<8x128xf32>
      %cst_39 = arith.constant dense<0.000000e+00> : vector<8x128xf32>
      %51 = tpu.matmul %49, %1, %cst_39 {dimension_numbers = #tpu.dot_dimension_numbers<[1], [0], [0], [1], [0, 0, 1, 1], [], []>} : vector<8x32xf32>, vector<32x128xf32>, vector<8x128xf32> -> vector<8x128xf32>
      %52 = arith.addf %50, %51 : vector<8x128xf32>
      %53 = arith.negf %52 : vector<8x128xf32>
      %54 = math.exp %53 : vector<8x128xf32>
      %cst_40 = arith.constant 1.000000e+00 : f32
      %55 = vector.broadcast %cst_40 : f32 to vector<8x128xf32>
      %56 = arith.addf %55, %54 : vector<8x128xf32>
      %57 = arith.divf %55, %56 : vector<8x128xf32>
      %58 = math.tanh %52 : vector<8x128xf32>
      %59 = vector.extract_strided_slice %57 {offsets = [0, 0], sizes = [8, 32], strides = [1, 1]} : vector<8x128xf32> to vector<8x32xf32>
      %60 = vector.extract_strided_slice %57 {offsets = [0, 32], sizes = [8, 32], strides = [1, 1]} : vector<8x128xf32> to vector<8x32xf32>
      %61 = vector.extract_strided_slice %58 {offsets = [0, 64], sizes = [8, 32], strides = [1, 1]} : vector<8x128xf32> to vector<8x32xf32>
      %62 = vector.extract_strided_slice %57 {offsets = [0, 96], sizes = [8, 32], strides = [1, 1]} : vector<8x128xf32> to vector<8x32xf32>
      %63 = arith.mulf %60, %47 : vector<8x32xf32>
      %64 = arith.mulf %59, %61 : vector<8x32xf32>
      %65 = arith.addf %63, %64 : vector<8x32xf32>
      %66 = math.tanh %65 : vector<8x32xf32>
      %67 = arith.mulf %62, %66 : vector<8x32xf32>
      %68 = vector.extract_strided_slice %31 {offsets = [0, 256], sizes = [8, 128], strides = [1, 1]} : vector<8x512xf32> to vector<8x128xf32>
      %cst_41 = arith.constant dense<0.000000e+00> : vector<8x128xf32>
      %69 = tpu.matmul %67, %1, %cst_41 {dimension_numbers = #tpu.dot_dimension_numbers<[1], [0], [0], [1], [0, 0, 1, 1], [], []>} : vector<8x32xf32>, vector<32x128xf32>, vector<8x128xf32> -> vector<8x128xf32>
      %70 = arith.addf %68, %69 : vector<8x128xf32>
      %71 = arith.negf %70 : vector<8x128xf32>
      %72 = math.exp %71 : vector<8x128xf32>
      %cst_42 = arith.constant 1.000000e+00 : f32
      %73 = vector.broadcast %cst_42 : f32 to vector<8x128xf32>
      %74 = arith.addf %73, %72 : vector<8x128xf32>
      %75 = arith.divf %73, %74 : vector<8x128xf32>
      %76 = math.tanh %70 : vector<8x128xf32>
      %77 = vector.extract_strided_slice %75 {offsets = [0, 0], sizes = [8, 32], strides = [1, 1]} : vector<8x128xf32> to vector<8x32xf32>
      %78 = vector.extract_strided_slice %75 {offsets = [0, 32], sizes = [8, 32], strides = [1, 1]} : vector<8x128xf32> to vector<8x32xf32>
      %79 = vector.extract_strided_slice %76 {offsets = [0, 64], sizes = [8, 32], strides = [1, 1]} : vector<8x128xf32> to vector<8x32xf32>
      %80 = vector.extract_strided_slice %75 {offsets = [0, 96], sizes = [8, 32], strides = [1, 1]} : vector<8x128xf32> to vector<8x32xf32>
      %81 = arith.mulf %78, %65 : vector<8x32xf32>
      %82 = arith.mulf %77, %79 : vector<8x32xf32>
      %83 = arith.addf %81, %82 : vector<8x32xf32>
      %84 = math.tanh %83 : vector<8x32xf32>
      %85 = arith.mulf %80, %84 : vector<8x32xf32>
      %86 = vector.extract_strided_slice %31 {offsets = [0, 384], sizes = [8, 128], strides = [1, 1]} : vector<8x512xf32> to vector<8x128xf32>
      %cst_43 = arith.constant dense<0.000000e+00> : vector<8x128xf32>
      %87 = tpu.matmul %85, %1, %cst_43 {dimension_numbers = #tpu.dot_dimension_numbers<[1], [0], [0], [1], [0, 0, 1, 1], [], []>} : vector<8x32xf32>, vector<32x128xf32>, vector<8x128xf32> -> vector<8x128xf32>
      %88 = arith.addf %86, %87 : vector<8x128xf32>
      %89 = arith.negf %88 : vector<8x128xf32>
      %90 = math.exp %89 : vector<8x128xf32>
      %cst_44 = arith.constant 1.000000e+00 : f32
      %91 = vector.broadcast %cst_44 : f32 to vector<8x128xf32>
      %92 = arith.addf %91, %90 : vector<8x128xf32>
      %93 = arith.divf %91, %92 : vector<8x128xf32>
      %94 = math.tanh %88 : vector<8x128xf32>
      %95 = vector.extract_strided_slice %93 {offsets = [0, 0], sizes = [8, 32], strides = [1, 1]} : vector<8x128xf32> to vector<8x32xf32>
      %96 = vector.extract_strided_slice %93 {offsets = [0, 32], sizes = [8, 32], strides = [1, 1]} : vector<8x128xf32> to vector<8x32xf32>
      %97 = vector.extract_strided_slice %94 {offsets = [0, 64], sizes = [8, 32], strides = [1, 1]} : vector<8x128xf32> to vector<8x32xf32>
      %98 = vector.extract_strided_slice %93 {offsets = [0, 96], sizes = [8, 32], strides = [1, 1]} : vector<8x128xf32> to vector<8x32xf32>
      %99 = arith.mulf %96, %83 : vector<8x32xf32>
      %100 = arith.mulf %95, %97 : vector<8x32xf32>
      %101 = arith.addf %99, %100 : vector<8x32xf32>
      %102 = math.tanh %101 : vector<8x32xf32>
      %103 = arith.mulf %98, %102 : vector<8x32xf32>
      %104 = tpu.concatenate %49, %67, %85, %103 in 1 : vector<8x32xf32>, vector<8x32xf32>, vector<8x32xf32>, vector<8x32xf32> -> vector<8x128xf32>
      %105 = arith.index_cast %29 : i32 to index
      %c0_45 = arith.constant 0 : index
      %106 = vector.load %arg11[%105, %c0_45] : memref<16x128xf32, #tpu.memory_space<vmem>>, vector<8x128xf32>
      tpu.vector_store %arg11[%105, %c0_45], %104 {strides = array<i32>} : memref<16x128xf32, #tpu.memory_space<vmem>>, vector<8x128xf32>,
      scf.yield %103, %101 : vector<8x32xf32>, vector<8x32xf32>
    }
    %c2_i32_15 = arith.constant 2 : i32
    %c0_16 = arith.constant 0 : index
    %c0_17 = arith.constant 0 : index
    %14 = vector.load %arg6[%c0_16, %c0_17] : memref<128x512xf32, #tpu.memory_space<vmem>>, vector<128x512xf32>
    %c0_18 = arith.constant 0 : index
    %c0_19 = arith.constant 0 : index
    %15 = vector.load %arg7[%c0_18, %c0_19] : memref<32x128xf32, #tpu.memory_space<vmem>>, vector<32x128xf32>
    %c0_20 = arith.constant 0 : index
    %c0_21 = arith.constant 0 : index
    %16 = vector.load %arg8[%c0_20, %c0_21] : memref<1x512xf32, #tpu.memory_space<vmem>>, vector<1x512xf32>
    %c0_22 = arith.constant 0 : index
    %c0_23 = arith.constant 0 : index
    %17 = vector.load %arg11[%c0_22, %c0_23] : memref<16x128xf32, #tpu.memory_space<vmem>>, vector<16x128xf32>
    %cst_24 = arith.constant dense<0.000000e+00> : vector<16x512xf32>
    %18 = tpu.matmul %17, %14, %cst_24 {dimension_numbers = #tpu.dot_dimension_numbers<[1], [0], [0], [1], [0, 0, 1, 1], [], []>} : vector<16x128xf32>, vector<128x512xf32>, vector<16x512xf32> -> vector<16x512xf32>
    %19 = vector.broadcast %16 : vector<1x512xf32> to vector<16x512xf32>
    %20 = arith.addf %18, %19 : vector<16x512xf32>
    %c0_25 = arith.constant 0 : index
    %c0_26 = arith.constant 0 : index
    %21 = vector.load %arg10[%c0_25, %c0_26] : memref<16x512xf32, #tpu.memory_space<vmem>>, vector<16x512xf32>
    tpu.vector_store %arg10[%c0_25, %c0_26], %20 {strides = array<i32>} : memref<16x512xf32, #tpu.memory_space<vmem>>, vector<16x512xf32>,
    %c1 = arith.constant 1 : index
    %c0_27 = arith.constant 0 : index
    %c0_28 = arith.constant 0 : index
    %22 = vector.load %arg1[%c1, %c0_27, %c0_28] : memref<2x8x32xf32, #tpu.memory_space<vmem>>, vector<1x8x32xf32>
    %23 = vector.shape_cast %22 : vector<1x8x32xf32> to vector<8x32xf32>
    %c1_29 = arith.constant 1 : index
    %c0_30 = arith.constant 0 : index
    %c0_31 = arith.constant 0 : index
    %24 = vector.load %arg2[%c1_29, %c0_30, %c0_31] : memref<2x8x32xf32, #tpu.memory_space<vmem>>, vector<1x8x32xf32>
    %25 = vector.shape_cast %24 : vector<1x8x32xf32> to vector<8x32xf32>
    %c0_i32_32 = arith.constant 0 : i32
    %c2_i32_33 = arith.constant 2 : i32
    %26 = arith.addi %c0_i32_32, %c2_i32_33 : i32
    %c1_i32_34 = arith.constant 1 : i32
    %27:2 = scf.for %arg12 = %c0_i32_32 to %26 step %c1_i32_34 iter_args(%arg13 = %23, %arg14 = %25) -> (vector<8x32xf32>, vector<8x32xf32>)  : i32 {
      %c8_i32 = arith.constant 8 : i32
      %28 = arith.muli %arg12, %c8_i32 : i32
      %29 = tpu.assume_multiple %28, 8 : i32
      %30 = arith.index_cast %29 : i32 to index
      %c0_36 = arith.constant 0 : index
      %31 = vector.load %arg10[%30, %c0_36] : memref<16x512xf32, #tpu.memory_space<vmem>>, vector<8x512xf32>
      %32 = vector.extract_strided_slice %31 {offsets = [0, 0], sizes = [8, 128], strides = [1, 1]} : vector<8x512xf32> to vector<8x128xf32>
      %cst_37 = arith.constant dense<0.000000e+00> : vector<8x128xf32>
      %33 = tpu.matmul %arg13, %15, %cst_37 {dimension_numbers = #tpu.dot_dimension_numbers<[1], [0], [0], [1], [0, 0, 1, 1], [], []>} : vector<8x32xf32>, vector<32x128xf32>, vector<8x128xf32> -> vector<8x128xf32>
      %34 = arith.addf %32, %33 : vector<8x128xf32>
      %35 = arith.negf %34 : vector<8x128xf32>
      %36 = math.exp %35 : vector<8x128xf32>
      %cst_38 = arith.constant 1.000000e+00 : f32
      %37 = vector.broadcast %cst_38 : f32 to vector<8x128xf32>
      %38 = arith.addf %37, %36 : vector<8x128xf32>
      %39 = arith.divf %37, %38 : vector<8x128xf32>
      %40 = math.tanh %34 : vector<8x128xf32>
      %41 = vector.extract_strided_slice %39 {offsets = [0, 0], sizes = [8, 32], strides = [1, 1]} : vector<8x128xf32> to vector<8x32xf32>
      %42 = vector.extract_strided_slice %39 {offsets = [0, 32], sizes = [8, 32], strides = [1, 1]} : vector<8x128xf32> to vector<8x32xf32>
      %43 = vector.extract_strided_slice %40 {offsets = [0, 64], sizes = [8, 32], strides = [1, 1]} : vector<8x128xf32> to vector<8x32xf32>
      %44 = vector.extract_strided_slice %39 {offsets = [0, 96], sizes = [8, 32], strides = [1, 1]} : vector<8x128xf32> to vector<8x32xf32>
      %45 = arith.mulf %42, %arg14 : vector<8x32xf32>
      %46 = arith.mulf %41, %43 : vector<8x32xf32>
      %47 = arith.addf %45, %46 : vector<8x32xf32>
      %48 = math.tanh %47 : vector<8x32xf32>
      %49 = arith.mulf %44, %48 : vector<8x32xf32>
      %50 = vector.extract_strided_slice %31 {offsets = [0, 128], sizes = [8, 128], strides = [1, 1]} : vector<8x512xf32> to vector<8x128xf32>
      %cst_39 = arith.constant dense<0.000000e+00> : vector<8x128xf32>
      %51 = tpu.matmul %49, %15, %cst_39 {dimension_numbers = #tpu.dot_dimension_numbers<[1], [0], [0], [1], [0, 0, 1, 1], [], []>} : vector<8x32xf32>, vector<32x128xf32>, vector<8x128xf32> -> vector<8x128xf32>
      %52 = arith.addf %50, %51 : vector<8x128xf32>
      %53 = arith.negf %52 : vector<8x128xf32>
      %54 = math.exp %53 : vector<8x128xf32>
      %cst_40 = arith.constant 1.000000e+00 : f32
      %55 = vector.broadcast %cst_40 : f32 to vector<8x128xf32>
      %56 = arith.addf %55, %54 : vector<8x128xf32>
      %57 = arith.divf %55, %56 : vector<8x128xf32>
      %58 = math.tanh %52 : vector<8x128xf32>
      %59 = vector.extract_strided_slice %57 {offsets = [0, 0], sizes = [8, 32], strides = [1, 1]} : vector<8x128xf32> to vector<8x32xf32>
      %60 = vector.extract_strided_slice %57 {offsets = [0, 32], sizes = [8, 32], strides = [1, 1]} : vector<8x128xf32> to vector<8x32xf32>
      %61 = vector.extract_strided_slice %58 {offsets = [0, 64], sizes = [8, 32], strides = [1, 1]} : vector<8x128xf32> to vector<8x32xf32>
      %62 = vector.extract_strided_slice %57 {offsets = [0, 96], sizes = [8, 32], strides = [1, 1]} : vector<8x128xf32> to vector<8x32xf32>
      %63 = arith.mulf %60, %47 : vector<8x32xf32>
      %64 = arith.mulf %59, %61 : vector<8x32xf32>
      %65 = arith.addf %63, %64 : vector<8x32xf32>
      %66 = math.tanh %65 : vector<8x32xf32>
      %67 = arith.mulf %62, %66 : vector<8x32xf32>
      %68 = vector.extract_strided_slice %31 {offsets = [0, 256], sizes = [8, 128], strides = [1, 1]} : vector<8x512xf32> to vector<8x128xf32>
      %cst_41 = arith.constant dense<0.000000e+00> : vector<8x128xf32>
      %69 = tpu.matmul %67, %15, %cst_41 {dimension_numbers = #tpu.dot_dimension_numbers<[1], [0], [0], [1], [0, 0, 1, 1], [], []>} : vector<8x32xf32>, vector<32x128xf32>, vector<8x128xf32> -> vector<8x128xf32>
      %70 = arith.addf %68, %69 : vector<8x128xf32>
      %71 = arith.negf %70 : vector<8x128xf32>
      %72 = math.exp %71 : vector<8x128xf32>
      %cst_42 = arith.constant 1.000000e+00 : f32
      %73 = vector.broadcast %cst_42 : f32 to vector<8x128xf32>
      %74 = arith.addf %73, %72 : vector<8x128xf32>
      %75 = arith.divf %73, %74 : vector<8x128xf32>
      %76 = math.tanh %70 : vector<8x128xf32>
      %77 = vector.extract_strided_slice %75 {offsets = [0, 0], sizes = [8, 32], strides = [1, 1]} : vector<8x128xf32> to vector<8x32xf32>
      %78 = vector.extract_strided_slice %75 {offsets = [0, 32], sizes = [8, 32], strides = [1, 1]} : vector<8x128xf32> to vector<8x32xf32>
      %79 = vector.extract_strided_slice %76 {offsets = [0, 64], sizes = [8, 32], strides = [1, 1]} : vector<8x128xf32> to vector<8x32xf32>
      %80 = vector.extract_strided_slice %75 {offsets = [0, 96], sizes = [8, 32], strides = [1, 1]} : vector<8x128xf32> to vector<8x32xf32>
      %81 = arith.mulf %78, %65 : vector<8x32xf32>
      %82 = arith.mulf %77, %79 : vector<8x32xf32>
      %83 = arith.addf %81, %82 : vector<8x32xf32>
      %84 = math.tanh %83 : vector<8x32xf32>
      %85 = arith.mulf %80, %84 : vector<8x32xf32>
      %86 = vector.extract_strided_slice %31 {offsets = [0, 384], sizes = [8, 128], strides = [1, 1]} : vector<8x512xf32> to vector<8x128xf32>
      %cst_43 = arith.constant dense<0.000000e+00> : vector<8x128xf32>
      %87 = tpu.matmul %85, %15, %cst_43 {dimension_numbers = #tpu.dot_dimension_numbers<[1], [0], [0], [1], [0, 0, 1, 1], [], []>} : vector<8x32xf32>, vector<32x128xf32>, vector<8x128xf32> -> vector<8x128xf32>
      %88 = arith.addf %86, %87 : vector<8x128xf32>
      %89 = arith.negf %88 : vector<8x128xf32>
      %90 = math.exp %89 : vector<8x128xf32>
      %cst_44 = arith.constant 1.000000e+00 : f32
      %91 = vector.broadcast %cst_44 : f32 to vector<8x128xf32>
      %92 = arith.addf %91, %90 : vector<8x128xf32>
      %93 = arith.divf %91, %92 : vector<8x128xf32>
      %94 = math.tanh %88 : vector<8x128xf32>
      %95 = vector.extract_strided_slice %93 {offsets = [0, 0], sizes = [8, 32], strides = [1, 1]} : vector<8x128xf32> to vector<8x32xf32>
      %96 = vector.extract_strided_slice %93 {offsets = [0, 32], sizes = [8, 32], strides = [1, 1]} : vector<8x128xf32> to vector<8x32xf32>
      %97 = vector.extract_strided_slice %94 {offsets = [0, 64], sizes = [8, 32], strides = [1, 1]} : vector<8x128xf32> to vector<8x32xf32>
      %98 = vector.extract_strided_slice %93 {offsets = [0, 96], sizes = [8, 32], strides = [1, 1]} : vector<8x128xf32> to vector<8x32xf32>
      %99 = arith.mulf %96, %83 : vector<8x32xf32>
      %100 = arith.mulf %95, %97 : vector<8x32xf32>
      %101 = arith.addf %99, %100 : vector<8x32xf32>
      %102 = math.tanh %101 : vector<8x32xf32>
      %103 = arith.mulf %98, %102 : vector<8x32xf32>
      %104 = tpu.concatenate %49, %67, %85, %103 in 1 : vector<8x32xf32>, vector<8x32xf32>, vector<8x32xf32>, vector<8x32xf32> -> vector<8x128xf32>
      %105 = arith.index_cast %29 : i32 to index
      %c0_45 = arith.constant 0 : index
      %106 = vector.load %arg9[%105, %c0_45] : memref<16x128xf32, #tpu.memory_space<vmem>>, vector<8x128xf32>
      tpu.vector_store %arg9[%105, %c0_45], %104 {strides = array<i32>} : memref<16x128xf32, #tpu.memory_space<vmem>>, vector<8x128xf32>,
      scf.yield %103, %101 : vector<8x32xf32>, vector<8x32xf32>
    }
    %c2_i32_35 = arith.constant 2 : i32
    return
  }
}

</mosaic_0001>

<llo_original>
// kernel: decoder_forward.1
$region0: #{decoder_forward.1}
  #allocation0 [shape = 'u32[]', space=smem, size = 0x4, offset = 0x4, fixed_abs, tag = 'smem constant byte address 0x4 - core index']
  #allocation1 [shape = 'u32[144,128]{1,0:T(1,128)}', space=vmem, size = 0x12000, scoped, tag = 'internal scratch']
  #allocation2 [shape = 'f32[16,512]{1,0:T(8,128)}', space=vmem, size = 0x8000, scoped, tag = 'scratch operand']
  #allocation3 [shape = 'f32[16,128]{1,0:T(8,128)}', space=vmem, size = 0x2000, scoped, tag = 'scratch operand']
  %s0 = inlined_call_operand.vmem [shape: f32[16,128], index: 0, kind: input, shape index: {}]
  %s1 = inlined_call_operand.vmem [shape: f32[2,8,32], index: 1, kind: input, shape index: {}]
  %s2 = inlined_call_operand.vmem [shape: f32[2,8,32], index: 2, kind: input, shape index: {}]
  %s3 = inlined_call_operand.vmem [shape: f32[128,512], index: 3, kind: input, shape index: {}]
  %s4 = inlined_call_operand.vmem [shape: f32[32,128], index: 4, kind: input, shape index: {}]
  %s5 = inlined_call_operand.vmem [shape: f32[1,512], index: 5, kind: input, shape index: {}]
  %s6 = inlined_call_operand.vmem [shape: f32[128,512], index: 6, kind: input, shape index: {}]
  %s7 = inlined_call_operand.vmem [shape: f32[32,128], index: 7, kind: input, shape index: {}]
  %s8 = inlined_call_operand.vmem [shape: f32[1,512], index: 8, kind: input, shape index: {}]
  %s9 = inlined_call_operand.vmem [shape: f32[16,128], index: 9, kind: output, shape index: {}]
  %s10 = sld [smem:[#allocation0]]
  $region60: #{decoder_forward.1} parent=0
    _
  %s12 = ssub.s32 1, %s10
  %s13 = scalar_select 0, %s12, %s10
  // Predicated region
  $region2: #{decoder_forward.1} parent=0 // pred_check
    _
  $region3: #{decoder_forward.1} parent=0 // pred_check_branch
    %15 = sbr.rel (0) target = $region5
  $region4: #{decoder_forward.1} parent=0 // pred_region
    _
  $region5: #{decoder_forward.1} parent=0 // pred_fallthru
    _
  // Predicated region
  $region6: #{decoder_forward.1} parent=0 // pred_check
    _
  $region7: #{decoder_forward.1} parent=0 // pred_check_branch
    %17 = sbr.rel (0) target = $region9
  $region8: #{decoder_forward.1} parent=0 // pred_region
    _
  $region9: #{decoder_forward.1} parent=0 // pred_fallthru
    _
  // Predicated region
  $region10: #{decoder_forward.1} parent=0 // pred_check
    _
  $region11: #{decoder_forward.1} parent=0 // pred_check_branch
    %19 = sbr.rel (0) target = $region13
  $region12: #{decoder_forward.1} parent=0 // pred_region
    _
  $region13: #{decoder_forward.1} parent=0 // pred_fallthru
    _
  // Predicated region
  $region14: #{decoder_forward.1} parent=0 // pred_check
    _
  $region15: #{decoder_forward.1} parent=0 // pred_check_branch
    %21 = sbr.rel (0) target = $region17
  $region16: #{decoder_forward.1} parent=0 // pred_region
    _
  $region17: #{decoder_forward.1} parent=0 // pred_fallthru
    _
  // Predicated region
  $region18: #{decoder_forward.1} parent=0 // pred_check
    _
  $region19: #{decoder_forward.1} parent=0 // pred_check_branch
    %23 = sbr.rel (0) target = $region21
  $region20: #{decoder_forward.1} parent=0 // pred_region
    _
  $region21: #{decoder_forward.1} parent=0 // pred_fallthru
    _
  // Predicated region
  $region22: #{decoder_forward.1} parent=0 // pred_check
    _
  $region23: #{decoder_forward.1} parent=0 // pred_check_branch
    %25 = sbr.rel (0) target = $region25
  $region24: #{decoder_forward.1} parent=0 // pred_region
    _
  $region25: #{decoder_forward.1} parent=0 // pred_fallthru
    _
  // Predicated region
  $region26: #{decoder_forward.1} parent=0 // pred_check
    _
  $region27: #{decoder_forward.1} parent=0 // pred_check_branch
    %27 = sbr.rel (0) target = $region29
  $region28: #{decoder_forward.1} parent=0 // pred_region
    _
  $region29: #{decoder_forward.1} parent=0 // pred_fallthru
    _
  // Predicated region
  $region30: #{decoder_forward.1} parent=0 // pred_check
    _
  $region31: #{decoder_forward.1} parent=0 // pred_check_branch
    %29 = sbr.rel (0) target = $region33
  $region32: #{decoder_forward.1} parent=0 // pred_region
    _
  $region33: #{decoder_forward.1} parent=0 // pred_fallthru
    _
  // Predicated region
  $region34: #{decoder_forward.1} parent=0 // pred_check
    _
  $region35: #{decoder_forward.1} parent=0 // pred_check_branch
    %31 = sbr.rel (0) target = $region37
  $region36: #{decoder_forward.1} parent=0 // pred_region
    _
  $region37: #{decoder_forward.1} parent=0 // pred_fallthru
    _
  %v32 = vld [vmem:[%s3] sm:$0xff]
  %v33 = vld [vmem:[%s3 + $0x8] sm:$0xff]
  %v34 = vld [vmem:[%s3 + $0x10] sm:$0xff]
  %v35 = vld [vmem:[%s3 + $0x18] sm:$0xff]
  %v36 = vld [vmem:[%s3 + $0x20] sm:$0xff]
  %v37 = vld [vmem:[%s3 + $0x28] sm:$0xff]
  %v38 = vld [vmem:[%s3 + $0x30] sm:$0xff]
  %v39 = vld [vmem:[%s3 + $0x38] sm:$0xff]
  %v40 = vld [vmem:[%s3 + $0x40] sm:$0xff]
  %v41 = vld [vmem:[%s3 + $0x48] sm:$0xff]
  %v42 = vld [vmem:[%s3 + $0x50] sm:$0xff]
  %v43 = vld [vmem:[%s3 + $0x58] sm:$0xff]
  %v44 = vld [vmem:[%s3 + $0x60] sm:$0xff]
  %v45 = vld [vmem:[%s3 + $0x68] sm:$0xff]
  %v46 = vld [vmem:[%s3 + $0x70] sm:$0xff]
  %v47 = vld [vmem:[%s3 + $0x78] sm:$0xff]
  %v48 = vld [vmem:[%s3 + $0x80] sm:$0xff]
  %v49 = vld [vmem:[%s3 + $0x88] sm:$0xff]
  %v50 = vld [vmem:[%s3 + $0x90] sm:$0xff]
  %v51 = vld [vmem:[%s3 + $0x98] sm:$0xff]
  %v52 = vld [vmem:[%s3 + $0xa0] sm:$0xff]
  %v53 = vld [vmem:[%s3 + $0xa8] sm:$0xff]
  %v54 = vld [vmem:[%s3 + $0xb0] sm:$0xff]
  %v55 = vld [vmem:[%s3 + $0xb8] sm:$0xff]
  %v56 = vld [vmem:[%s3 + $0xc0] sm:$0xff]
  %v57 = vld [vmem:[%s3 + $0xc8] sm:$0xff]
  %v58 = vld [vmem:[%s3 + $0xd0] sm:$0xff]
  %v59 = vld [vmem:[%s3 + $0xd8] sm:$0xff]
  %v60 = vld [vmem:[%s3 + $0xe0] sm:$0xff]
  %v61 = vld [vmem:[%s3 + $0xe8] sm:$0xff]
  %v62 = vld [vmem:[%s3 + $0xf0] sm:$0xff]
  %v63 = vld [vmem:[%s3 + $0xf8] sm:$0xff]
  %v64 = vld [vmem:[%s3 + $0x100] sm:$0xff]
  %v65 = vld [vmem:[%s3 + $0x108] sm:$0xff]
  %v66 = vld [vmem:[%s3 + $0x110] sm:$0xff]
  %v67 = vld [vmem:[%s3 + $0x118] sm:$0xff]
  %v68 = vld [vmem:[%s3 + $0x120] sm:$0xff]
  %v69 = vld [vmem:[%s3 + $0x128] sm:$0xff]
  %v70 = vld [vmem:[%s3 + $0x130] sm:$0xff]
  %v71 = vld [vmem:[%s3 + $0x138] sm:$0xff]
  %v72 = vld [vmem:[%s3 + $0x140] sm:$0xff]
  %v73 = vld [vmem:[%s3 + $0x148] sm:$0xff]
  %v74 = vld [vmem:[%s3 + $0x150] sm:$0xff]
  %v75 = vld [vmem:[%s3 + $0x158] sm:$0xff]
  %v76 = vld [vmem:[%s3 + $0x160] sm:$0xff]
  %v77 = vld [vmem:[%s3 + $0x168] sm:$0xff]
  %v78 = vld [vmem:[%s3 + $0x170] sm:$0xff]
  %v79 = vld [vmem:[%s3 + $0x178] sm:$0xff]
  %v80 = vld [vmem:[%s3 + $0x180] sm:$0xff]
  %v81 = vld [vmem:[%s3 + $0x188] sm:$0xff]
  %v82 = vld [vmem:[%s3 + $0x190] sm:$0xff]
  %v83 = vld [vmem:[%s3 + $0x198] sm:$0xff]
  %v84 = vld [vmem:[%s3 + $0x1a0] sm:$0xff]
  %v85 = vld [vmem:[%s3 + $0x1a8] sm:$0xff]
  %v86 = vld [vmem:[%s3 + $0x1b0] sm:$0xff]
  %v87 = vld [vmem:[%s3 + $0x1b8] sm:$0xff]
  %v88 = vld [vmem:[%s3 + $0x1c0] sm:$0xff]
  %v89 = vld [vmem:[%s3 + $0x1c8] sm:$0xff]
  %v90 = vld [vmem:[%s3 + $0x1d0] sm:$0xff]
  %v91 = vld [vmem:[%s3 + $0x1d8] sm:$0xff]
  %v92 = vld [vmem:[%s3 + $0x1e0] sm:$0xff]
  %v93 = vld [vmem:[%s3 + $0x1e8] sm:$0xff]
  %v94 = vld [vmem:[%s3 + $0x1f0] sm:$0xff]
  %v95 = vld [vmem:[%s3 + $0x1f8] sm:$0xff]
  %v96 = vld [vmem:[%s4] sm:$0xff]
  %v97 = vld [vmem:[%s4 + $0x8] sm:$0xff]
  %v98 = vld [vmem:[%s4 + $0x10] sm:$0xff]
  %v99 = vld [vmem:[%s4 + $0x18] sm:$0xff]
  %v100 = vld [vmem:[%s5] sm:$0xf]
  %v101 = vld [vmem:[%s0] sm:$0xff]
  %v102 = vld [vmem:[%s0 + $0x8] sm:$0xff]
  %v104 = vlaneseq
  %v105 = vshrl.u32 %v104, 7
  %v106 = vsub.s32 0, %v105
  %v107 = vrot.slane %v100, %v106
  %v108 = vlaneseq
  %v109 = vshrl.u32 %v108, 7
  %v110 = vsub.s32 1, %v109
  %v111 = vrot.slane %v100, %v110
  %v112 = vlaneseq
  %v113 = vshrl.u32 %v112, 7
  %v114 = vsub.s32 2, %v113
  %v115 = vrot.slane %v100, %v114
  %v116 = vlaneseq
  %v117 = vshrl.u32 %v116, 7
  %v118 = vsub.s32 3, %v117
  %v119 = vrot.slane %v100, %v118
  %124 = vmatprep.subr.mxu0 %v33
  %125 = vmatpush1.msra.mxu0 %v32
  %126 = vmatprep.subr.mxu0 %v37
  %127 = vmatpush1.msra.mxu0 %v36
  %128 = vmatprep.subr.mxu0 %v41
  %129 = vmatpush1.msra.mxu0 %v40
  %130 = vmatprep.subr.mxu0 %v45
  %131 = vmatpush1.msra.mxu0 %v44
  %132 = vmatprep.subr.mxu0 %v49
  %133 = vmatpush1.msra.mxu0 %v48
  %134 = vmatprep.subr.mxu0 %v53
  %135 = vmatpush1.msra.mxu0 %v52
  %136 = vmatprep.subr.mxu0 %v57
  %137 = vmatpush1.msra.mxu0 %v56
  %138 = vmatprep.subr.mxu0 %v61
  %139 = vmatpush1.msra.mxu0 %v60
  %140 = vmatprep.subr.mxu0 %v65
  %141 = vmatpush1.msra.mxu0 %v64
  %142 = vmatprep.subr.mxu0 %v69
  %143 = vmatpush1.msra.mxu0 %v68
  %144 = vmatprep.subr.mxu0 %v73
  %145 = vmatpush1.msra.mxu0 %v72
  %146 = vmatprep.subr.mxu0 %v77
  %147 = vmatpush1.msra.mxu0 %v76
  %148 = vmatprep.subr.mxu0 %v81
  %149 = vmatpush1.msra.mxu0 %v80
  %150 = vmatprep.subr.mxu0 %v85
  %151 = vmatpush1.msra.mxu0 %v84
  %152 = vmatprep.subr.mxu0 %v89
  %153 = vmatpush1.msra.mxu0 %v88
  %154 = vmatprep.subr.mxu0 %v93
  %155 = vmatpush1.msra.mxu0 %v92
  %156 = vmatprep.subr.mxu0 0.0
  %157 = vmatpush1.msra.mxu0 0.0
  %158 = vmatprep.subr.mxu0 0.0
  %159 = vmatpush1.msra.mxu0 0.0
  %160 = vmatprep.subr.mxu0 0.0
  %161 = vmatpush1.msra.mxu0 0.0
  %162 = vmatprep.subr.mxu0 0.0
  %163 = vmatpush1.msra.mxu0 0.0
  %164 = vmatprep.subr.mxu0 0.0
  %165 = vmatpush1.msra.mxu0 0.0
  %166 = vmatprep.subr.mxu0 0.0
  %167 = vmatpush1.msra.mxu0 0.0
  %168 = vmatprep.subr.mxu0 0.0
  %169 = vmatpush1.msra.mxu0 0.0
  %170 = vmatprep.subr.mxu0 0.0
  %171 = vmatpush1.msra.mxu0 0.0
  %172 = vmatprep.subr.mxu0 0.0
  %173 = vmatpush1.msra.mxu0 0.0
  %174 = vmatprep.subr.mxu0 0.0
  %175 = vmatpush1.msra.mxu0 0.0
  %176 = vmatprep.subr.mxu0 0.0
  %177 = vmatpush1.msra.mxu0 0.0
  %178 = vmatprep.subr.mxu0 0.0
  %179 = vmatpush1.msra.mxu0 0.0
  %180 = vmatprep.subr.mxu0 0.0
  %181 = vmatpush1.msra.mxu0 0.0
  %182 = vmatprep.subr.mxu0 0.0
  %183 = vmatpush1.msra.mxu0 0.0
  %184 = vmatprep.subr.mxu0 0.0
  %185 = vmatpush1.msra.mxu0 0.0
  %186 = vmatprep.subr.mxu0 0.0
  %187 = vmatpush1.msra.mxu0 0.0
  %188 = vmatprep.mubr.f32.mxu0 0.0
  %189 = vmatmul.mubr.f32.gmra.mrb[0].mxu0 %v101
  %v190 = vpop.f32.mrb[0].mxu0
  %v191 = vadd.f32 %v107, %v190
  %v192 = vpop.f32.mrb[0].mxu0
  %v193 = vadd.f32 %v111, %v192
  %194 = vmatprep.mubr.f32.mxu0 0.0
  %195 = vmatmul.mubr.f32.gmra.mrb[0].mxu0 %v102
  %v196 = vpop.f32.mrb[0].mxu0
  %v197 = vadd.f32 %v107, %v196
  %v198 = vpop.f32.mrb[0].mxu0
  %v199 = vadd.f32 %v111, %v198
  %200 = vdwg.mxu0
  %201 = vmatprep.subr.mxu0 %v35
  %202 = vmatpush1.msra.mxu0 %v34
  %203 = vmatprep.subr.mxu0 %v39
  %204 = vmatpush1.msra.mxu0 %v38
  %205 = vmatprep.subr.mxu0 %v43
  %206 = vmatpush1.msra.mxu0 %v42
  %207 = vmatprep.subr.mxu0 %v47
  %208 = vmatpush1.msra.mxu0 %v46
  %209 = vmatprep.subr.mxu0 %v51
  %210 = vmatpush1.msra.mxu0 %v50
  %211 = vmatprep.subr.mxu0 %v55
  %212 = vmatpush1.msra.mxu0 %v54
  %213 = vmatprep.subr.mxu0 %v59
  %214 = vmatpush1.msra.mxu0 %v58
  %215 = vmatprep.subr.mxu0 %v63
  %216 = vmatpush1.msra.mxu0 %v62
  %217 = vmatprep.subr.mxu0 %v67
  %218 = vmatpush1.msra.mxu0 %v66
  %219 = vmatprep.subr.mxu0 %v71
  %220 = vmatpush1.msra.mxu0 %v70
  %221 = vmatprep.subr.mxu0 %v75
  %222 = vmatpush1.msra.mxu0 %v74
  %223 = vmatprep.subr.mxu0 %v79
  %224 = vmatpush1.msra.mxu0 %v78
  %225 = vmatprep.subr.mxu0 %v83
  %226 = vmatpush1.msra.mxu0 %v82
  %227 = vmatprep.subr.mxu0 %v87
  %228 = vmatpush1.msra.mxu0 %v86
  %229 = vmatprep.subr.mxu0 %v91
  %230 = vmatpush1.msra.mxu0 %v90
  %231 = vmatprep.subr.mxu0 %v95
  %232 = vmatpush1.msra.mxu0 %v94
  %233 = vmatprep.subr.mxu0 0.0
  %234 = vmatpush1.msra.mxu0 0.0
  %235 = vmatprep.subr.mxu0 0.0
  %236 = vmatpush1.msra.mxu0 0.0
  %237 = vmatprep.subr.mxu0 0.0
  %238 = vmatpush1.msra.mxu0 0.0
  %239 = vmatprep.subr.mxu0 0.0
  %240 = vmatpush1.msra.mxu0 0.0
  %241 = vmatprep.subr.mxu0 0.0
  %242 = vmatpush1.msra.mxu0 0.0
  %243 = vmatprep.subr.mxu0 0.0
  %244 = vmatpush1.msra.mxu0 0.0
  %245 = vmatprep.subr.mxu0 0.0
  %246 = vmatpush1.msra.mxu0 0.0
  %247 = vmatprep.subr.mxu0 0.0
  %248 = vmatpush1.msra.mxu0 0.0
  %249 = vmatprep.subr.mxu0 0.0
  %250 = vmatpush1.msra.mxu0 0.0
  %251 = vmatprep.subr.mxu0 0.0
  %252 = vmatpush1.msra.mxu0 0.0
  %253 = vmatprep.subr.mxu0 0.0
  %254 = vmatpush1.msra.mxu0 0.0
  %255 = vmatprep.subr.mxu0 0.0
  %256 = vmatpush1.msra.mxu0 0.0
  %257 = vmatprep.subr.mxu0 0.0
  %258 = vmatpush1.msra.mxu0 0.0
  %259 = vmatprep.subr.mxu0 0.0
  %260 = vmatpush1.msra.mxu0 0.0
  %261 = vmatprep.subr.mxu0 0.0
  %262 = vmatpush1.msra.mxu0 0.0
  %263 = vmatprep.subr.mxu0 0.0
  %264 = vmatpush1.msra.mxu0 0.0
  %265 = vmatprep.mubr.f32.mxu0 0.0
  %266 = vmatmul.mubr.f32.gmra.mrb[0].mxu0 %v101
  %v267 = vpop.f32.mrb[0].mxu0
  %v268 = vadd.f32 %v115, %v267
  %v269 = vpop.f32.mrb[0].mxu0
  %v270 = vadd.f32 %v119, %v269
  %271 = vmatprep.mubr.f32.mxu0 0.0
  %272 = vmatmul.mubr.f32.gmra.mrb[0].mxu0 %v102
  %v273 = vpop.f32.mrb[0].mxu0
  %v274 = vadd.f32 %v115, %v273
  %v275 = vpop.f32.mrb[0].mxu0
  %v276 = vadd.f32 %v119, %v275
  %277 = vdwg.mxu0
  %278 = vst [vmem:[#allocation2] sm:$0xff] %v191
  %279 = vst [vmem:[#allocation2 + $0x8] sm:$0xff] %v193
  %280 = vst [vmem:[#allocation2 + $0x10] sm:$0xff] %v268
  %281 = vst [vmem:[#allocation2 + $0x18] sm:$0xff] %v270
  %282 = vst [vmem:[#allocation2 + $0x20] sm:$0xff] %v197
  %283 = vst [vmem:[#allocation2 + $0x28] sm:$0xff] %v199
  %284 = vst [vmem:[#allocation2 + $0x30] sm:$0xff] %v274
  %285 = vst [vmem:[#allocation2 + $0x38] sm:$0xff] %v276
  %v286 = vld [vmem:[%s1] sm:$0xff]
  %v287 = vld [vmem:[%s2] sm:$0xff]
  loop: start=0, step=1, limit=2
  $region38: #{decoder_forward.1} parent=0 // loop_pre_header
    _
  $region39: #{decoder_forward.1} parent=0 // loop_header
    %s289 = sphi 0, %s293
    %p290 = scmp.ge.s32.totalorder %s289, 2
    %v294 = vphi %v286, %v725
    %v295 = vphi %v287, %v729
  $region40: #{decoder_forward.1} parent=0 // loop_header_branch
    %292 = sbr.rel (%p290) target = $region44
  $region41: #{decoder_forward.1} parent=0 // loop_body
    %s296 = smul.u32 %s289, 8
    %s297 = sshra.s32 %s296, 3
    %s298 = sand.u32 %s296, 7
    %s299 = smul.u32 %s297, 4
    %s300 = smul.addr %s299, 8
    %s301 = scalar_lea.vmem [#allocation2], %s300
    %v302 = vld [vmem:[%s301] sm:$0xff]
    %v303 = vld [vmem:[%s301 + $0x8] sm:$0xff]
    %v304 = vld [vmem:[%s301 + $0x10] sm:$0xff]
    %v305 = vld [vmem:[%s301 + $0x18] sm:$0xff]
    %vm306 = vcmask 261120
    %v308 = vsel %vm306, %v294, 0
    %310 = vmatprep.subr.mxu0 0.0
    %311 = vmatpush1.msra.mxu0 %v96
    %312 = vmatprep.subr.mxu0 0.0
    %313 = vmatpush1.msra.mxu0 %v97
    %314 = vmatprep.subr.mxu0 0.0
    %315 = vmatpush1.msra.mxu0 %v98
    %316 = vmatprep.subr.mxu0 0.0
    %317 = vmatpush1.msra.mxu0 %v99
    %318 = vmatprep.subr.mxu0 0.0
    %319 = vmatpush1.msra.mxu0 0.0
    %320 = vmatprep.subr.mxu0 0.0
    %321 = vmatpush1.msra.mxu0 0.0
    %322 = vmatprep.subr.mxu0 0.0
    %323 = vmatpush1.msra.mxu0 0.0
    %324 = vmatprep.subr.mxu0 0.0
    %325 = vmatpush1.msra.mxu0 0.0
    %326 = vmatprep.subr.mxu0 0.0
    %327 = vmatpush1.msra.mxu0 0.0
    %328 = vmatprep.subr.mxu0 0.0
    %329 = vmatpush1.msra.mxu0 0.0
    %330 = vmatprep.subr.mxu0 0.0
    %331 = vmatpush1.msra.mxu0 0.0
    %332 = vmatprep.subr.mxu0 0.0
    %333 = vmatpush1.msra.mxu0 0.0
    %334 = vmatprep.subr.mxu0 0.0
    %335 = vmatpush1.msra.mxu0 0.0
    %336 = vmatprep.subr.mxu0 0.0
    %337 = vmatpush1.msra.mxu0 0.0
    %338 = vmatprep.subr.mxu0 0.0
    %339 = vmatpush1.msra.mxu0 0.0
    %340 = vmatprep.subr.mxu0 0.0
    %341 = vmatpush1.msra.mxu0 0.0
    %342 = vmatprep.subr.mxu0 0.0
    %343 = vmatpush1.msra.mxu0 0.0
    %344 = vmatprep.subr.mxu0 0.0
    %345 = vmatpush1.msra.mxu0 0.0
    %346 = vmatprep.subr.mxu0 0.0
    %347 = vmatpush1.msra.mxu0 0.0
    %348 = vmatprep.subr.mxu0 0.0
    %349 = vmatpush1.msra.mxu0 0.0
    %350 = vmatprep.subr.mxu0 0.0
    %351 = vmatpush1.msra.mxu0 0.0
    %352 = vmatprep.subr.mxu0 0.0
    %353 = vmatpush1.msra.mxu0 0.0
    %354 = vmatprep.subr.mxu0 0.0
    %355 = vmatpush1.msra.mxu0 0.0
    %356 = vmatprep.subr.mxu0 0.0
    %357 = vmatpush1.msra.mxu0 0.0
    %358 = vmatprep.subr.mxu0 0.0
    %359 = vmatpush1.msra.mxu0 0.0
    %360 = vmatprep.subr.mxu0 0.0
    %361 = vmatpush1.msra.mxu0 0.0
    %362 = vmatprep.subr.mxu0 0.0
    %363 = vmatpush1.msra.mxu0 0.0
    %364 = vmatprep.subr.mxu0 0.0
    %365 = vmatpush1.msra.mxu0 0.0
    %366 = vmatprep.subr.mxu0 0.0
    %367 = vmatpush1.msra.mxu0 0.0
    %368 = vmatprep.subr.mxu0 0.0
    %369 = vmatpush1.msra.mxu0 0.0
    %370 = vmatprep.subr.mxu0 0.0
    %371 = vmatpush1.msra.mxu0 0.0
    %372 = vmatprep.subr.mxu0 0.0
    %373 = vmatpush1.msra.mxu0 0.0
    %374 = vmatprep.mubr.f32.mxu0 0.0
    %375 = vmatmul.mubr.f32.gmra.mrb[0].mxu0 %v308
    %v376 = vpop.f32.mrb[0].mxu0
    %v377 = vadd.f32 0.0, %v376
    %v378 = vpop.f32.mrb[0].mxu0
    %379 = vdwg.mxu0
    %v380 = vadd.f32 %v302, %v377
    %v381 = vxor.u32 %v380, 2147483648
    %v382 = vmul.f32 %v381, 1.442695
    %v383 = vpow.pop %v382
    %v384 = vadd.f32 %v383, 1.0
    %v385 = vrcp.pop %v384
    %v386 = vmul.f32 1.0, %v385
    %v387 = vtanh.pop %v380
    %389 = vrot.lane.b32.xlu0 %v295, 32
    %v390 = vpop.permute.xlu0 %389
    %v392 = vmul.f32 %v386, %v390
    %394 = vrot.lane.b32.xlu0 %v387, 64
    %v395 = vpop.permute.xlu0 %394
    %v397 = vmul.f32 %v386, %v395
    %399 = vrot.lane.b32.xlu0 %v397, 32
    %v400 = vpop.permute.xlu0 %399
    %v402 = vadd.f32 %v392, %v400
    %v403 = vtanh.pop %v402
    %405 = vrot.lane.b32.xlu0 %v403, 64
    %v406 = vpop.permute.xlu0 %405
    %v408 = vmul.f32 %v386, %v406
    %410 = vrot.lane.b32.xlu0 %v408, 32
    %v411 = vpop.permute.xlu0 %410
    %v412 = vsel %vm306, %v411, 0
    %414 = vmatprep.subr.mxu0 0.0
    %415 = vmatpush1.msra.mxu0 %v96
    %416 = vmatprep.subr.mxu0 0.0
    %417 = vmatpush1.msra.mxu0 %v97
    %418 = vmatprep.subr.mxu0 0.0
    %419 = vmatpush1.msra.mxu0 %v98
    %420 = vmatprep.subr.mxu0 0.0
    %421 = vmatpush1.msra.mxu0 %v99
    %422 = vmatprep.subr.mxu0 0.0
    %423 = vmatpush1.msra.mxu0 0.0
    %424 = vmatprep.subr.mxu0 0.0
    %425 = vmatpush1.msra.mxu0 0.0
    %426 = vmatprep.subr.mxu0 0.0
    %427 = vmatpush1.msra.mxu0 0.0
    %428 = vmatprep.subr.mxu0 0.0
    %429 = vmatpush1.msra.mxu0 0.0
    %430 = vmatprep.subr.mxu0 0.0
    %431 = vmatpush1.msra.mxu0 0.0
    %432 = vmatprep.subr.mxu0 0.0
    %433 = vmatpush1.msra.mxu0 0.0
    %434 = vmatprep.subr.mxu0 0.0
    %435 = vmatpush1.msra.mxu0 0.0
    %436 = vmatprep.subr.mxu0 0.0
    %437 = vmatpush1.msra.mxu0 0.0
    %438 = vmatprep.subr.mxu0 0.0
    %439 = vmatpush1.msra.mxu0 0.0
    %440 = vmatprep.subr.mxu0 0.0
    %441 = vmatpush1.msra.mxu0 0.0
    %442 = vmatprep.subr.mxu0 0.0
    %443 = vmatpush1.msra.mxu0 0.0
    %444 = vmatprep.subr.mxu0 0.0
    %445 = vmatpush1.msra.mxu0 0.0
    %446 = vmatprep.subr.mxu0 0.0
    %447 = vmatpush1.msra.mxu0 0.0
    %448 = vmatprep.subr.mxu0 0.0
    %449 = vmatpush1.msra.mxu0 0.0
    %450 = vmatprep.subr.mxu0 0.0
    %451 = vmatpush1.msra.mxu0 0.0
    %452 = vmatprep.subr.mxu0 0.0
    %453 = vmatpush1.msra.mxu0 0.0
    %454 = vmatprep.subr.mxu0 0.0
    %455 = vmatpush1.msra.mxu0 0.0
    %456 = vmatprep.subr.mxu0 0.0
    %457 = vmatpush1.msra.mxu0 0.0
    %458 = vmatprep.subr.mxu0 0.0
    %459 = vmatpush1.msra.mxu0 0.0
    %460 = vmatprep.subr.mxu0 0.0
    %461 = vmatpush1.msra.mxu0 0.0
    %462 = vmatprep.subr.mxu0 0.0
    %463 = vmatpush1.msra.mxu0 0.0
    %464 = vmatprep.subr.mxu0 0.0
    %465 = vmatpush1.msra.mxu0 0.0
    %466 = vmatprep.subr.mxu0 0.0
    %467 = vmatpush1.msra.mxu0 0.0
    %468 = vmatprep.subr.mxu0 0.0
    %469 = vmatpush1.msra.mxu0 0.0
    %470 = vmatprep.subr.mxu0 0.0
    %471 = vmatpush1.msra.mxu0 0.0
    %472 = vmatprep.subr.mxu0 0.0
    %473 = vmatpush1.msra.mxu0 0.0
    %474 = vmatprep.subr.mxu0 0.0
    %475 = vmatpush1.msra.mxu0 0.0
    %476 = vmatprep.subr.mxu0 0.0
    %477 = vmatpush1.msra.mxu0 0.0
    %478 = vmatprep.mubr.f32.mxu0 0.0
    %479 = vmatmul.mubr.f32.gmra.mrb[0].mxu0 %v412
    %v480 = vpop.f32.mrb[0].mxu0
    %v481 = vadd.f32 0.0, %v480
    %v482 = vpop.f32.mrb[0].mxu0
    %483 = vdwg.mxu0
    %v484 = vadd.f32 %v303, %v481
    %v485 = vxor.u32 %v484, 2147483648
    %v486 = vmul.f32 %v485, 1.442695
    %v487 = vpow.pop %v486
    %v488 = vadd.f32 %v487, 1.0
    %v489 = vrcp.pop %v488
    %v490 = vmul.f32 1.0, %v489
    %v491 = vtanh.pop %v484
    %v492 = vmul.f32 %v490, %v402
    %494 = vrot.lane.b32.xlu0 %v491, 64
    %v495 = vpop.permute.xlu0 %494
    %v497 = vmul.f32 %v490, %v495
    %499 = vrot.lane.b32.xlu0 %v497, 32
    %v500 = vpop.permute.xlu0 %499
    %v502 = vadd.f32 %v492, %v500
    %v503 = vtanh.pop %v502
    %505 = vrot.lane.b32.xlu0 %v503, 64
    %v506 = vpop.permute.xlu0 %505
    %v508 = vmul.f32 %v490, %v506
    %510 = vrot.lane.b32.xlu0 %v508, 32
    %v511 = vpop.permute.xlu0 %510
    %v512 = vsel %vm306, %v511, 0
    %514 = vmatprep.subr.mxu0 0.0
    %515 = vmatpush1.msra.mxu0 %v96
    %516 = vmatprep.subr.mxu0 0.0
    %517 = vmatpush1.msra.mxu0 %v97
    %518 = vmatprep.subr.mxu0 0.0
    %519 = vmatpush1.msra.mxu0 %v98
    %520 = vmatprep.subr.mxu0 0.0
    %521 = vmatpush1.msra.mxu0 %v99
    %522 = vmatprep.subr.mxu0 0.0
    %523 = vmatpush1.msra.mxu0 0.0
    %524 = vmatprep.subr.mxu0 0.0
    %525 = vmatpush1.msra.mxu0 0.0
    %526 = vmatprep.subr.mxu0 0.0
    %527 = vmatpush1.msra.mxu0 0.0
    %528 = vmatprep.subr.mxu0 0.0
    %529 = vmatpush1.msra.mxu0 0.0
    %530 = vmatprep.subr.mxu0 0.0
    %531 = vmatpush1.msra.mxu0 0.0
    %532 = vmatprep.subr.mxu0 0.0
    %533 = vmatpush1.msra.mxu0 0.0
    %534 = vmatprep.subr.mxu0 0.0
    %535 = vmatpush1.msra.mxu0 0.0
    %536 = vmatprep.subr.mxu0 0.0
    %537 = vmatpush1.msra.mxu0 0.0
    %538 = vmatprep.subr.mxu0 0.0
    %539 = vmatpush1.msra.mxu0 0.0
    %540 = vmatprep.subr.mxu0 0.0
    %541 = vmatpush1.msra.mxu0 0.0
    %542 = vmatprep.subr.mxu0 0.0
    %543 = vmatpush1.msra.mxu0 0.0
    %544 = vmatprep.subr.mxu0 0.0
    %545 = vmatpush1.msra.mxu0 0.0
    %546 = vmatprep.subr.mxu0 0.0
    %547 = vmatpush1.msra.mxu0 0.0
    %548 = vmatprep.subr.mxu0 0.0
    %549 = vmatpush1.msra.mxu0 0.0
    %550 = vmatprep.subr.mxu0 0.0
    %551 = vmatpush1.msra.mxu0 0.0
    %552 = vmatprep.subr.mxu0 0.0
    %553 = vmatpush1.msra.mxu0 0.0
    %554 = vmatprep.subr.mxu0 0.0
    %555 = vmatpush1.msra.mxu0 0.0
    %556 = vmatprep.subr.mxu0 0.0
    %557 = vmatpush1.msra.mxu0 0.0
    %558 = vmatprep.subr.mxu0 0.0
    %559 = vmatpush1.msra.mxu0 0.0
    %560 = vmatprep.subr.mxu0 0.0
    %561 = vmatpush1.msra.mxu0 0.0
    %562 = vmatprep.subr.mxu0 0.0
    %563 = vmatpush1.msra.mxu0 0.0
    %564 = vmatprep.subr.mxu0 0.0
    %565 = vmatpush1.msra.mxu0 0.0
    %566 = vmatprep.subr.mxu0 0.0
    %567 = vmatpush1.msra.mxu0 0.0
    %568 = vmatprep.subr.mxu0 0.0
    %569 = vmatpush1.msra.mxu0 0.0
    %570 = vmatprep.subr.mxu0 0.0
    %571 = vmatpush1.msra.mxu0 0.0
    %572 = vmatprep.subr.mxu0 0.0
    %573 = vmatpush1.msra.mxu0 0.0
    %574 = vmatprep.subr.mxu0 0.0
    %575 = vmatpush1.msra.mxu0 0.0
    %576 = vmatprep.subr.mxu0 0.0
    %577 = vmatpush1.msra.mxu0 0.0
    %578 = vmatprep.mubr.f32.mxu0 0.0
    %579 = vmatmul.mubr.f32.gmra.mrb[0].mxu0 %v512
    %v580 = vpop.f32.mrb[0].mxu0
    %v581 = vadd.f32 0.0, %v580
    %v582 = vpop.f32.mrb[0].mxu0
    %583 = vdwg.mxu0
    %v584 = vadd.f32 %v304, %v581
    %v585 = vxor.u32 %v584, 2147483648
    %v586 = vmul.f32 %v585, 1.442695
    %v587 = vpow.pop %v586
    %v588 = vadd.f32 %v587, 1.0
    %v589 = vrcp.pop %v588
    %v590 = vmul.f32 1.0, %v589
    %v591 = vtanh.pop %v584
    %v592 = vmul.f32 %v590, %v502
    %594 = vrot.lane.b32.xlu0 %v591, 64
    %v595 = vpop.permute.xlu0 %594
    %v597 = vmul.f32 %v590, %v595
    %599 = vrot.lane.b32.xlu0 %v597, 32
    %v600 = vpop.permute.xlu0 %599
    %v602 = vadd.f32 %v592, %v600
    %v603 = vtanh.pop %v602
    %605 = vrot.lane.b32.xlu0 %v603, 64
    %v606 = vpop.permute.xlu0 %605
    %v608 = vmul.f32 %v590, %v606
    %610 = vrot.lane.b32.xlu0 %v608, 32
    %v611 = vpop.permute.xlu0 %610
    %v612 = vsel %vm306, %v611, 0
    %614 = vmatprep.subr.mxu0 0.0
    %615 = vmatpush1.msra.mxu0 %v96
    %616 = vmatprep.subr.mxu0 0.0
    %617 = vmatpush1.msra.mxu0 %v97
    %618 = vmatprep.subr.mxu0 0.0
    %619 = vmatpush1.msra.mxu0 %v98
    %620 = vmatprep.subr.mxu0 0.0
    %621 = vmatpush1.msra.mxu0 %v99
    %622 = vmatprep.subr.mxu0 0.0
    %623 = vmatpush1.msra.mxu0 0.0
    %624 = vmatprep.subr.mxu0 0.0
    %625 = vmatpush1.msra.mxu0 0.0
    %626 = vmatprep.subr.mxu0 0.0
    %627 = vmatpush1.msra.mxu0 0.0
    %628 = vmatprep.subr.mxu0 0.0
    %629 = vmatpush1.msra.mxu0 0.0
    %630 = vmatprep.subr.mxu0 0.0
    %631 = vmatpush1.msra.mxu0 0.0
    %632 = vmatprep.subr.mxu0 0.0
    %633 = vmatpush1.msra.mxu0 0.0
    %634 = vmatprep.subr.mxu0 0.0
    %635 = vmatpush1.msra.mxu0 0.0
    %636 = vmatprep.subr.mxu0 0.0
    %637 = vmatpush1.msra.mxu0 0.0
    %638 = vmatprep.subr.mxu0 0.0
    %639 = vmatpush1.msra.mxu0 0.0
    %640 = vmatprep.subr.mxu0 0.0
    %641 = vmatpush1.msra.mxu0 0.0
    %642 = vmatprep.subr.mxu0 0.0
    %643 = vmatpush1.msra.mxu0 0.0
    %644 = vmatprep.subr.mxu0 0.0
    %645 = vmatpush1.msra.mxu0 0.0
    %646 = vmatprep.subr.mxu0 0.0
    %647 = vmatpush1.msra.mxu0 0.0
    %648 = vmatprep.subr.mxu0 0.0
    %649 = vmatpush1.msra.mxu0 0.0
    %650 = vmatprep.subr.mxu0 0.0
    %651 = vmatpush1.msra.mxu0 0.0
    %652 = vmatprep.subr.mxu0 0.0
    %653 = vmatpush1.msra.mxu0 0.0
    %654 = vmatprep.subr.mxu0 0.0
    %655 = vmatpush1.msra.mxu0 0.0
    %656 = vmatprep.subr.mxu0 0.0
    %657 = vmatpush1.msra.mxu0 0.0
    %658 = vmatprep.subr.mxu0 0.0
    %659 = vmatpush1.msra.mxu0 0.0
    %660 = vmatprep.subr.mxu0 0.0
    %661 = vmatpush1.msra.mxu0 0.0
    %662 = vmatprep.subr.mxu0 0.0
    %663 = vmatpush1.msra.mxu0 0.0
    %664 = vmatprep.subr.mxu0 0.0
    %665 = vmatpush1.msra.mxu0 0.0
    %666 = vmatprep.subr.mxu0 0.0
    %667 = vmatpush1.msra.mxu0 0.0
    %668 = vmatprep.subr.mxu0 0.0
    %669 = vmatpush1.msra.mxu0 0.0
    %670 = vmatprep.subr.mxu0 0.0
    %671 = vmatpush1.msra.mxu0 0.0
    %672 = vmatprep.subr.mxu0 0.0
    %673 = vmatpush1.msra.mxu0 0.0
    %674 = vmatprep.subr.mxu0 0.0
    %675 = vmatpush1.msra.mxu0 0.0
    %676 = vmatprep.subr.mxu0 0.0
    %677 = vmatpush1.msra.mxu0 0.0
    %678 = vmatprep.mubr.f32.mxu0 0.0
    %679 = vmatmul.mubr.f32.gmra.mrb[0].mxu0 %v612
    %v680 = vpop.f32.mrb[0].mxu0
    %v681 = vadd.f32 0.0, %v680
    %v682 = vpop.f32.mrb[0].mxu0
    %683 = vdwg.mxu0
    %v684 = vadd.f32 %v305, %v681
    %v685 = vxor.u32 %v684, 2147483648
    %v686 = vmul.f32 %v685, 1.442695
    %v687 = vpow.pop %v686
    %v688 = vadd.f32 %v687, 1.0
    %v689 = vrcp.pop %v688
    %v690 = vmul.f32 1.0, %v689
    %v691 = vtanh.pop %v684
    %v692 = vmul.f32 %v690, %v602
    %694 = vrot.lane.b32.xlu0 %v691, 64
    %v695 = vpop.permute.xlu0 %694
    %v697 = vmul.f32 %v690, %v695
    %699 = vrot.lane.b32.xlu0 %v697, 32
    %v700 = vpop.permute.xlu0 %699
    %v702 = vadd.f32 %v692, %v700
    %v703 = vtanh.pop %v702
    %705 = vrot.lane.b32.xlu0 %v703, 64
    %v706 = vpop.permute.xlu0 %705
    %v708 = vmul.f32 %v690, %v706
    %710 = vrot.lane.b32.xlu0 %v508, 64
    %v711 = vpop.permute.xlu0 %710
    %713 = vrot.lane.b32.xlu0 %v608, 96
    %v714 = vpop.permute.xlu0 %713
    %v716 = vsel %vm306, %v411, %v711
    %vm717 = vcmask 523264
    %v718 = vsel %vm717, %v716, %v714
    %vm719 = vcmask 785408
    %v720 = vsel %vm719, %v718, %v708
    %s721 = scalar_lea.vmem [#allocation3], %s296
    %722 = vst [vmem:[%s721] sm:$0xff] %v720
    %724 = vrot.lane.b32.xlu0 %v708, 32
    %v725 = vpop.permute.xlu0 %724
    %728 = vrot.lane.b32.xlu0 %v702, 96
    %v729 = vpop.permute.xlu0 %728
  $region42: #{decoder_forward.1} parent=0 // loop_footer
    %s293 = sadd.s32 1, %s289
  $region43: #{decoder_forward.1} parent=0 // loop_footer_branch
    %288 = sbr.rel target = $region39
  $region44: #{decoder_forward.1} parent=0 // loop_exit
    _
  %v731 = vld [vmem:[%s6] sm:$0xff]
  %v732 = vld [vmem:[%s6 + $0x8] sm:$0xff]
  %v733 = vld [vmem:[%s6 + $0x10] sm:$0xff]
  %v734 = vld [vmem:[%s6 + $0x18] sm:$0xff]
  %v735 = vld [vmem:[%s6 + $0x20] sm:$0xff]
  %v736 = vld [vmem:[%s6 + $0x28] sm:$0xff]
  %v737 = vld [vmem:[%s6 + $0x30] sm:$0xff]
  %v738 = vld [vmem:[%s6 + $0x38] sm:$0xff]
  %v739 = vld [vmem:[%s6 + $0x40] sm:$0xff]
  %v740 = vld [vmem:[%s6 + $0x48] sm:$0xff]
  %v741 = vld [vmem:[%s6 + $0x50] sm:$0xff]
  %v742 = vld [vmem:[%s6 + $0x58] sm:$0xff]
  %v743 = vld [vmem:[%s6 + $0x60] sm:$0xff]
  %v744 = vld [vmem:[%s6 + $0x68] sm:$0xff]
  %v745 = vld [vmem:[%s6 + $0x70] sm:$0xff]
  %v746 = vld [vmem:[%s6 + $0x78] sm:$0xff]
  %v747 = vld [vmem:[%s6 + $0x80] sm:$0xff]
  %v748 = vld [vmem:[%s6 + $0x88] sm:$0xff]
  %v749 = vld [vmem:[%s6 + $0x90] sm:$0xff]
  %v750 = vld [vmem:[%s6 + $0x98] sm:$0xff]
  %v751 = vld [vmem:[%s6 + $0xa0] sm:$0xff]
  %v752 = vld [vmem:[%s6 + $0xa8] sm:$0xff]
  %v753 = vld [vmem:[%s6 + $0xb0] sm:$0xff]
  %v754 = vld [vmem:[%s6 + $0xb8] sm:$0xff]
  %v755 = vld [vmem:[%s6 + $0xc0] sm:$0xff]
  %v756 = vld [vmem:[%s6 + $0xc8] sm:$0xff]
  %v757 = vld [vmem:[%s6 + $0xd0] sm:$0xff]
  %v758 = vld [vmem:[%s6 + $0xd8] sm:$0xff]
  %v759 = vld [vmem:[%s6 + $0xe0] sm:$0xff]
  %v760 = vld [vmem:[%s6 + $0xe8] sm:$0xff]
  %v761 = vld [vmem:[%s6 + $0xf0] sm:$0xff]
  %v762 = vld [vmem:[%s6 + $0xf8] sm:$0xff]
  %v763 = vld [vmem:[%s6 + $0x100] sm:$0xff]
  %v764 = vld [vmem:[%s6 + $0x108] sm:$0xff]
  %v765 = vld [vmem:[%s6 + $0x110] sm:$0xff]
  %v766 = vld [vmem:[%s6 + $0x118] sm:$0xff]
  %v767 = vld [vmem:[%s6 + $0x120] sm:$0xff]
  %v768 = vld [vmem:[%s6 + $0x128] sm:$0xff]
  %v769 = vld [vmem:[%s6 + $0x130] sm:$0xff]
  %v770 = vld [vmem:[%s6 + $0x138] sm:$0xff]
  %v771 = vld [vmem:[%s6 + $0x140] sm:$0xff]
  %v772 = vld [vmem:[%s6 + $0x148] sm:$0xff]
  %v773 = vld [vmem:[%s6 + $0x150] sm:$0xff]
  %v774 = vld [vmem:[%s6 + $0x158] sm:$0xff]
  %v775 = vld [vmem:[%s6 + $0x160] sm:$0xff]
  %v776 = vld [vmem:[%s6 + $0x168] sm:$0xff]
  %v777 = vld [vmem:[%s6 + $0x170] sm:$0xff]
  %v778 = vld [vmem:[%s6 + $0x178] sm:$0xff]
  %v779 = vld [vmem:[%s6 + $0x180] sm:$0xff]
  %v780 = vld [vmem:[%s6 + $0x188] sm:$0xff]
  %v781 = vld [vmem:[%s6 + $0x190] sm:$0xff]
  %v782 = vld [vmem:[%s6 + $0x198] sm:$0xff]
  %v783 = vld [vmem:[%s6 + $0x1a0] sm:$0xff]
  %v784 = vld [vmem:[%s6 + $0x1a8] sm:$0xff]
  %v785 = vld [vmem:[%s6 + $0x1b0] sm:$0xff]
  %v786 = vld [vmem:[%s6 + $0x1b8] sm:$0xff]
  %v787 = vld [vmem:[%s6 + $0x1c0] sm:$0xff]
  %v788 = vld [vmem:[%s6 + $0x1c8] sm:$0xff]
  %v789 = vld [vmem:[%s6 + $0x1d0] sm:$0xff]
  %v790 = vld [vmem:[%s6 + $0x1d8] sm:$0xff]
  %v791 = vld [vmem:[%s6 + $0x1e0] sm:$0xff]
  %v792 = vld [vmem:[%s6 + $0x1e8] sm:$0xff]
  %v793 = vld [vmem:[%s6 + $0x1f0] sm:$0xff]
  %v794 = vld [vmem:[%s6 + $0x1f8] sm:$0xff]
  %v795 = vld [vmem:[%s7] sm:$0xff]
  %v796 = vld [vmem:[%s7 + $0x8] sm:$0xff]
  %v797 = vld [vmem:[%s7 + $0x10] sm:$0xff]
  %v798 = vld [vmem:[%s7 + $0x18] sm:$0xff]
  %v799 = vld [vmem:[%s8] sm:$0xf]
  %v800 = vld [vmem:[#allocation3] sm:$0xff]
  %v801 = vld [vmem:[#allocation3 + $0x8] sm:$0xff]
  %v803 = vlaneseq
  %v804 = vshrl.u32 %v803, 7
  %v805 = vsub.s32 0, %v804
  %v806 = vrot.slane %v799, %v805
  %v807 = vlaneseq
  %v808 = vshrl.u32 %v807, 7
  %v809 = vsub.s32 1, %v808
  %v810 = vrot.slane %v799, %v809
  %v811 = vlaneseq
  %v812 = vshrl.u32 %v811, 7
  %v813 = vsub.s32 2, %v812
  %v814 = vrot.slane %v799, %v813
  %v815 = vlaneseq
  %v816 = vshrl.u32 %v815, 7
  %v817 = vsub.s32 3, %v816
  %v818 = vrot.slane %v799, %v817
  %823 = vmatprep.subr.mxu0 %v732
  %824 = vmatpush1.msra.mxu0 %v731
  %825 = vmatprep.subr.mxu0 %v736
  %826 = vmatpush1.msra.mxu0 %v735
  %827 = vmatprep.subr.mxu0 %v740
  %828 = vmatpush1.msra.mxu0 %v739
  %829 = vmatprep.subr.mxu0 %v744
  %830 = vmatpush1.msra.mxu0 %v743
  %831 = vmatprep.subr.mxu0 %v748
  %832 = vmatpush1.msra.mxu0 %v747
  %833 = vmatprep.subr.mxu0 %v752
  %834 = vmatpush1.msra.mxu0 %v751
  %835 = vmatprep.subr.mxu0 %v756
  %836 = vmatpush1.msra.mxu0 %v755
  %837 = vmatprep.subr.mxu0 %v760
  %838 = vmatpush1.msra.mxu0 %v759
  %839 = vmatprep.subr.mxu0 %v764
  %840 = vmatpush1.msra.mxu0 %v763
  %841 = vmatprep.subr.mxu0 %v768
  %842 = vmatpush1.msra.mxu0 %v767
  %843 = vmatprep.subr.mxu0 %v772
  %844 = vmatpush1.msra.mxu0 %v771
  %845 = vmatprep.subr.mxu0 %v776
  %846 = vmatpush1.msra.mxu0 %v775
  %847 = vmatprep.subr.mxu0 %v780
  %848 = vmatpush1.msra.mxu0 %v779
  %849 = vmatprep.subr.mxu0 %v784
  %850 = vmatpush1.msra.mxu0 %v783
  %851 = vmatprep.subr.mxu0 %v788
  %852 = vmatpush1.msra.mxu0 %v787
  %853 = vmatprep.subr.mxu0 %v792
  %854 = vmatpush1.msra.mxu0 %v791
  %855 = vmatprep.subr.mxu0 0.0
  %856 = vmatpush1.msra.mxu0 0.0
  %857 = vmatprep.subr.mxu0 0.0
  %858 = vmatpush1.msra.mxu0 0.0
  %859 = vmatprep.subr.mxu0 0.0
  %860 = vmatpush1.msra.mxu0 0.0
  %861 = vmatprep.subr.mxu0 0.0
  %862 = vmatpush1.msra.mxu0 0.0
  %863 = vmatprep.subr.mxu0 0.0
  %864 = vmatpush1.msra.mxu0 0.0
  %865 = vmatprep.subr.mxu0 0.0
  %866 = vmatpush1.msra.mxu0 0.0
  %867 = vmatprep.subr.mxu0 0.0
  %868 = vmatpush1.msra.mxu0 0.0
  %869 = vmatprep.subr.mxu0 0.0
  %870 = vmatpush1.msra.mxu0 0.0
  %871 = vmatprep.subr.mxu0 0.0
  %872 = vmatpush1.msra.mxu0 0.0
  %873 = vmatprep.subr.mxu0 0.0
  %874 = vmatpush1.msra.mxu0 0.0
  %875 = vmatprep.subr.mxu0 0.0
  %876 = vmatpush1.msra.mxu0 0.0
  %877 = vmatprep.subr.mxu0 0.0
  %878 = vmatpush1.msra.mxu0 0.0
  %879 = vmatprep.subr.mxu0 0.0
  %880 = vmatpush1.msra.mxu0 0.0
  %881 = vmatprep.subr.mxu0 0.0
  %882 = vmatpush1.msra.mxu0 0.0
  %883 = vmatprep.subr.mxu0 0.0
  %884 = vmatpush1.msra.mxu0 0.0
  %885 = vmatprep.subr.mxu0 0.0
  %886 = vmatpush1.msra.mxu0 0.0
  %887 = vmatprep.mubr.f32.mxu0 0.0
  %888 = vmatmul.mubr.f32.gmra.mrb[0].mxu0 %v800
  %v889 = vpop.f32.mrb[0].mxu0
  %v890 = vadd.f32 %v806, %v889
  %v891 = vpop.f32.mrb[0].mxu0
  %v892 = vadd.f32 %v810, %v891
  %893 = vmatprep.mubr.f32.mxu0 0.0
  %894 = vmatmul.mubr.f32.gmra.mrb[0].mxu0 %v801
  %v895 = vpop.f32.mrb[0].mxu0
  %v896 = vadd.f32 %v806, %v895
  %v897 = vpop.f32.mrb[0].mxu0
  %v898 = vadd.f32 %v810, %v897
  %899 = vdwg.mxu0
  %900 = vmatprep.subr.mxu0 %v734
  %901 = vmatpush1.msra.mxu0 %v733
  %902 = vmatprep.subr.mxu0 %v738
  %903 = vmatpush1.msra.mxu0 %v737
  %904 = vmatprep.subr.mxu0 %v742
  %905 = vmatpush1.msra.mxu0 %v741
  %906 = vmatprep.subr.mxu0 %v746
  %907 = vmatpush1.msra.mxu0 %v745
  %908 = vmatprep.subr.mxu0 %v750
  %909 = vmatpush1.msra.mxu0 %v749
  %910 = vmatprep.subr.mxu0 %v754
  %911 = vmatpush1.msra.mxu0 %v753
  %912 = vmatprep.subr.mxu0 %v758
  %913 = vmatpush1.msra.mxu0 %v757
  %914 = vmatprep.subr.mxu0 %v762
  %915 = vmatpush1.msra.mxu0 %v761
  %916 = vmatprep.subr.mxu0 %v766
  %917 = vmatpush1.msra.mxu0 %v765
  %918 = vmatprep.subr.mxu0 %v770
  %919 = vmatpush1.msra.mxu0 %v769
  %920 = vmatprep.subr.mxu0 %v774
  %921 = vmatpush1.msra.mxu0 %v773
  %922 = vmatprep.subr.mxu0 %v778
  %923 = vmatpush1.msra.mxu0 %v777
  %924 = vmatprep.subr.mxu0 %v782
  %925 = vmatpush1.msra.mxu0 %v781
  %926 = vmatprep.subr.mxu0 %v786
  %927 = vmatpush1.msra.mxu0 %v785
  %928 = vmatprep.subr.mxu0 %v790
  %929 = vmatpush1.msra.mxu0 %v789
  %930 = vmatprep.subr.mxu0 %v794
  %931 = vmatpush1.msra.mxu0 %v793
  %932 = vmatprep.subr.mxu0 0.0
  %933 = vmatpush1.msra.mxu0 0.0
  %934 = vmatprep.subr.mxu0 0.0
  %935 = vmatpush1.msra.mxu0 0.0
  %936 = vmatprep.subr.mxu0 0.0
  %937 = vmatpush1.msra.mxu0 0.0
  %938 = vmatprep.subr.mxu0 0.0
  %939 = vmatpush1.msra.mxu0 0.0
  %940 = vmatprep.subr.mxu0 0.0
  %941 = vmatpush1.msra.mxu0 0.0
  %942 = vmatprep.subr.mxu0 0.0
  %943 = vmatpush1.msra.mxu0 0.0
  %944 = vmatprep.subr.mxu0 0.0
  %945 = vmatpush1.msra.mxu0 0.0
  %946 = vmatprep.subr.mxu0 0.0
  %947 = vmatpush1.msra.mxu0 0.0
  %948 = vmatprep.subr.mxu0 0.0
  %949 = vmatpush1.msra.mxu0 0.0
  %950 = vmatprep.subr.mxu0 0.0
  %951 = vmatpush1.msra.mxu0 0.0
  %952 = vmatprep.subr.mxu0 0.0
  %953 = vmatpush1.msra.mxu0 0.0
  %954 = vmatprep.subr.mxu0 0.0
  %955 = vmatpush1.msra.mxu0 0.0
  %956 = vmatprep.subr.mxu0 0.0
  %957 = vmatpush1.msra.mxu0 0.0
  %958 = vmatprep.subr.mxu0 0.0
  %959 = vmatpush1.msra.mxu0 0.0
  %960 = vmatprep.subr.mxu0 0.0
  %961 = vmatpush1.msra.mxu0 0.0
  %962 = vmatprep.subr.mxu0 0.0
  %963 = vmatpush1.msra.mxu0 0.0
  %964 = vmatprep.mubr.f32.mxu0 0.0
  %965 = vmatmul.mubr.f32.gmra.mrb[0].mxu0 %v800
  %v966 = vpop.f32.mrb[0].mxu0
  %v967 = vadd.f32 %v814, %v966
  %v968 = vpop.f32.mrb[0].mxu0
  %v969 = vadd.f32 %v818, %v968
  %970 = vmatprep.mubr.f32.mxu0 0.0
  %971 = vmatmul.mubr.f32.gmra.mrb[0].mxu0 %v801
  %v972 = vpop.f32.mrb[0].mxu0
  %v973 = vadd.f32 %v814, %v972
  %v974 = vpop.f32.mrb[0].mxu0
  %v975 = vadd.f32 %v818, %v974
  %976 = vdwg.mxu0
  %977 = vst [vmem:[#allocation2] sm:$0xff] %v890
  %978 = vst [vmem:[#allocation2 + $0x8] sm:$0xff] %v892
  %979 = vst [vmem:[#allocation2 + $0x10] sm:$0xff] %v967
  %980 = vst [vmem:[#allocation2 + $0x18] sm:$0xff] %v969
  %981 = vst [vmem:[#allocation2 + $0x20] sm:$0xff] %v896
  %982 = vst [vmem:[#allocation2 + $0x28] sm:$0xff] %v898
  %983 = vst [vmem:[#allocation2 + $0x30] sm:$0xff] %v973
  %984 = vst [vmem:[#allocation2 + $0x38] sm:$0xff] %v975
  %s985 = scalar_lea.vmem %s1, 8
  %v986 = vld [vmem:[%s985] sm:$0xff]
  %s987 = scalar_lea.vmem %s2, 8
  %v988 = vld [vmem:[%s987] sm:$0xff]
  loop: start=0, step=1, limit=2
  $region45: #{decoder_forward.1} parent=0 // loop_pre_header
    _
  $region46: #{decoder_forward.1} parent=0 // loop_header
    %s990 = sphi 0, %s994
    %p991 = scmp.ge.s32.totalorder %s990, 2
    %v995 = vphi %v986, %v1426
    %v996 = vphi %v988, %v1430
  $region47: #{decoder_forward.1} parent=0 // loop_header_branch
    %993 = sbr.rel (%p991) target = $region51
  $region48: #{decoder_forward.1} parent=0 // loop_body
    %s997 = smul.u32 %s990, 8
    %s998 = sshra.s32 %s997, 3
    %s999 = sand.u32 %s997, 7
    %s1000 = smul.u32 %s998, 4
    %s1001 = smul.addr %s1000, 8
    %s1002 = scalar_lea.vmem [#allocation2], %s1001
    %v1003 = vld [vmem:[%s1002] sm:$0xff]
    %v1004 = vld [vmem:[%s1002 + $0x8] sm:$0xff]
    %v1005 = vld [vmem:[%s1002 + $0x10] sm:$0xff]
    %v1006 = vld [vmem:[%s1002 + $0x18] sm:$0xff]
    %vm1007 = vcmask 261120
    %v1009 = vsel %vm1007, %v995, 0
    %1011 = vmatprep.subr.mxu0 0.0
    %1012 = vmatpush1.msra.mxu0 %v795
    %1013 = vmatprep.subr.mxu0 0.0
    %1014 = vmatpush1.msra.mxu0 %v796
    %1015 = vmatprep.subr.mxu0 0.0
    %1016 = vmatpush1.msra.mxu0 %v797
    %1017 = vmatprep.subr.mxu0 0.0
    %1018 = vmatpush1.msra.mxu0 %v798
    %1019 = vmatprep.subr.mxu0 0.0
    %1020 = vmatpush1.msra.mxu0 0.0
    %1021 = vmatprep.subr.mxu0 0.0
    %1022 = vmatpush1.msra.mxu0 0.0
    %1023 = vmatprep.subr.mxu0 0.0
    %1024 = vmatpush1.msra.mxu0 0.0
    %1025 = vmatprep.subr.mxu0 0.0
    %1026 = vmatpush1.msra.mxu0 0.0
    %1027 = vmatprep.subr.mxu0 0.0
    %1028 = vmatpush1.msra.mxu0 0.0
    %1029 = vmatprep.subr.mxu0 0.0
    %1030 = vmatpush1.msra.mxu0 0.0
    %1031 = vmatprep.subr.mxu0 0.0
    %1032 = vmatpush1.msra.mxu0 0.0
    %1033 = vmatprep.subr.mxu0 0.0
    %1034 = vmatpush1.msra.mxu0 0.0
    %1035 = vmatprep.subr.mxu0 0.0
    %1036 = vmatpush1.msra.mxu0 0.0
    %1037 = vmatprep.subr.mxu0 0.0
    %1038 = vmatpush1.msra.mxu0 0.0
    %1039 = vmatprep.subr.mxu0 0.0
    %1040 = vmatpush1.msra.mxu0 0.0
    %1041 = vmatprep.subr.mxu0 0.0
    %1042 = vmatpush1.msra.mxu0 0.0
    %1043 = vmatprep.subr.mxu0 0.0
    %1044 = vmatpush1.msra.mxu0 0.0
    %1045 = vmatprep.subr.mxu0 0.0
    %1046 = vmatpush1.msra.mxu0 0.0
    %1047 = vmatprep.subr.mxu0 0.0
    %1048 = vmatpush1.msra.mxu0 0.0
    %1049 = vmatprep.subr.mxu0 0.0
    %1050 = vmatpush1.msra.mxu0 0.0
    %1051 = vmatprep.subr.mxu0 0.0
    %1052 = vmatpush1.msra.mxu0 0.0
    %1053 = vmatprep.subr.mxu0 0.0
    %1054 = vmatpush1.msra.mxu0 0.0
    %1055 = vmatprep.subr.mxu0 0.0
    %1056 = vmatpush1.msra.mxu0 0.0
    %1057 = vmatprep.subr.mxu0 0.0
    %1058 = vmatpush1.msra.mxu0 0.0
    %1059 = vmatprep.subr.mxu0 0.0
    %1060 = vmatpush1.msra.mxu0 0.0
    %1061 = vmatprep.subr.mxu0 0.0
    %1062 = vmatpush1.msra.mxu0 0.0
    %1063 = vmatprep.subr.mxu0 0.0
    %1064 = vmatpush1.msra.mxu0 0.0
    %1065 = vmatprep.subr.mxu0 0.0
    %1066 = vmatpush1.msra.mxu0 0.0
    %1067 = vmatprep.subr.mxu0 0.0
    %1068 = vmatpush1.msra.mxu0 0.0
    %1069 = vmatprep.subr.mxu0 0.0
    %1070 = vmatpush1.msra.mxu0 0.0
    %1071 = vmatprep.subr.mxu0 0.0
    %1072 = vmatpush1.msra.mxu0 0.0
    %1073 = vmatprep.subr.mxu0 0.0
    %1074 = vmatpush1.msra.mxu0 0.0
    %1075 = vmatprep.mubr.f32.mxu0 0.0
    %1076 = vmatmul.mubr.f32.gmra.mrb[0].mxu0 %v1009
    %v1077 = vpop.f32.mrb[0].mxu0
    %v1078 = vadd.f32 0.0, %v1077
    %v1079 = vpop.f32.mrb[0].mxu0
    %1080 = vdwg.mxu0
    %v1081 = vadd.f32 %v1003, %v1078
    %v1082 = vxor.u32 %v1081, 2147483648
    %v1083 = vmul.f32 %v1082, 1.442695
    %v1084 = vpow.pop %v1083
    %v1085 = vadd.f32 %v1084, 1.0
    %v1086 = vrcp.pop %v1085
    %v1087 = vmul.f32 1.0, %v1086
    %v1088 = vtanh.pop %v1081
    %1090 = vrot.lane.b32.xlu0 %v996, 32
    %v1091 = vpop.permute.xlu0 %1090
    %v1093 = vmul.f32 %v1087, %v1091
    %1095 = vrot.lane.b32.xlu0 %v1088, 64
    %v1096 = vpop.permute.xlu0 %1095
    %v1098 = vmul.f32 %v1087, %v1096
    %1100 = vrot.lane.b32.xlu0 %v1098, 32
    %v1101 = vpop.permute.xlu0 %1100
    %v1103 = vadd.f32 %v1093, %v1101
    %v1104 = vtanh.pop %v1103
    %1106 = vrot.lane.b32.xlu0 %v1104, 64
    %v1107 = vpop.permute.xlu0 %1106
    %v1109 = vmul.f32 %v1087, %v1107
    %1111 = vrot.lane.b32.xlu0 %v1109, 32
    %v1112 = vpop.permute.xlu0 %1111
    %v1113 = vsel %vm1007, %v1112, 0
    %1115 = vmatprep.subr.mxu0 0.0
    %1116 = vmatpush1.msra.mxu0 %v795
    %1117 = vmatprep.subr.mxu0 0.0
    %1118 = vmatpush1.msra.mxu0 %v796
    %1119 = vmatprep.subr.mxu0 0.0
    %1120 = vmatpush1.msra.mxu0 %v797
    %1121 = vmatprep.subr.mxu0 0.0
    %1122 = vmatpush1.msra.mxu0 %v798
    %1123 = vmatprep.subr.mxu0 0.0
    %1124 = vmatpush1.msra.mxu0 0.0
    %1125 = vmatprep.subr.mxu0 0.0
    %1126 = vmatpush1.msra.mxu0 0.0
    %1127 = vmatprep.subr.mxu0 0.0
    %1128 = vmatpush1.msra.mxu0 0.0
    %1129 = vmatprep.subr.mxu0 0.0
    %1130 = vmatpush1.msra.mxu0 0.0
    %1131 = vmatprep.subr.mxu0 0.0
    %1132 = vmatpush1.msra.mxu0 0.0
    %1133 = vmatprep.subr.mxu0 0.0
    %1134 = vmatpush1.msra.mxu0 0.0
    %1135 = vmatprep.subr.mxu0 0.0
    %1136 = vmatpush1.msra.mxu0 0.0
    %1137 = vmatprep.subr.mxu0 0.0
    %1138 = vmatpush1.msra.mxu0 0.0
    %1139 = vmatprep.subr.mxu0 0.0
    %1140 = vmatpush1.msra.mxu0 0.0
    %1141 = vmatprep.subr.mxu0 0.0
    %1142 = vmatpush1.msra.mxu0 0.0
    %1143 = vmatprep.subr.mxu0 0.0
    %1144 = vmatpush1.msra.mxu0 0.0
    %1145 = vmatprep.subr.mxu0 0.0
    %1146 = vmatpush1.msra.mxu0 0.0
    %1147 = vmatprep.subr.mxu0 0.0
    %1148 = vmatpush1.msra.mxu0 0.0
    %1149 = vmatprep.subr.mxu0 0.0
    %1150 = vmatpush1.msra.mxu0 0.0
    %1151 = vmatprep.subr.mxu0 0.0
    %1152 = vmatpush1.msra.mxu0 0.0
    %1153 = vmatprep.subr.mxu0 0.0
    %1154 = vmatpush1.msra.mxu0 0.0
    %1155 = vmatprep.subr.mxu0 0.0
    %1156 = vmatpush1.msra.mxu0 0.0
    %1157 = vmatprep.subr.mxu0 0.0
    %1158 = vmatpush1.msra.mxu0 0.0
    %1159 = vmatprep.subr.mxu0 0.0
    %1160 = vmatpush1.msra.mxu0 0.0
    %1161 = vmatprep.subr.mxu0 0.0
    %1162 = vmatpush1.msra.mxu0 0.0
    %1163 = vmatprep.subr.mxu0 0.0
    %1164 = vmatpush1.msra.mxu0 0.0
    %1165 = vmatprep.subr.mxu0 0.0
    %1166 = vmatpush1.msra.mxu0 0.0
    %1167 = vmatprep.subr.mxu0 0.0
    %1168 = vmatpush1.msra.mxu0 0.0
    %1169 = vmatprep.subr.mxu0 0.0
    %1170 = vmatpush1.msra.mxu0 0.0
    %1171 = vmatprep.subr.mxu0 0.0
    %1172 = vmatpush1.msra.mxu0 0.0
    %1173 = vmatprep.subr.mxu0 0.0
    %1174 = vmatpush1.msra.mxu0 0.0
    %1175 = vmatprep.subr.mxu0 0.0
    %1176 = vmatpush1.msra.mxu0 0.0
    %1177 = vmatprep.subr.mxu0 0.0
    %1178 = vmatpush1.msra.mxu0 0.0
    %1179 = vmatprep.mubr.f32.mxu0 0.0
    %1180 = vmatmul.mubr.f32.gmra.mrb[0].mxu0 %v1113
    %v1181 = vpop.f32.mrb[0].mxu0
    %v1182 = vadd.f32 0.0, %v1181
    %v1183 = vpop.f32.mrb[0].mxu0
    %1184 = vdwg.mxu0
    %v1185 = vadd.f32 %v1004, %v1182
    %v1186 = vxor.u32 %v1185, 2147483648
    %v1187 = vmul.f32 %v1186, 1.442695
    %v1188 = vpow.pop %v1187
    %v1189 = vadd.f32 %v1188, 1.0
    %v1190 = vrcp.pop %v1189
    %v1191 = vmul.f32 1.0, %v1190
    %v1192 = vtanh.pop %v1185
    %v1193 = vmul.f32 %v1191, %v1103
    %1195 = vrot.lane.b32.xlu0 %v1192, 64
    %v1196 = vpop.permute.xlu0 %1195
    %v1198 = vmul.f32 %v1191, %v1196
    %1200 = vrot.lane.b32.xlu0 %v1198, 32
    %v1201 = vpop.permute.xlu0 %1200
    %v1203 = vadd.f32 %v1193, %v1201
    %v1204 = vtanh.pop %v1203
    %1206 = vrot.lane.b32.xlu0 %v1204, 64
    %v1207 = vpop.permute.xlu0 %1206
    %v1209 = vmul.f32 %v1191, %v1207
    %1211 = vrot.lane.b32.xlu0 %v1209, 32
    %v1212 = vpop.permute.xlu0 %1211
    %v1213 = vsel %vm1007, %v1212, 0
    %1215 = vmatprep.subr.mxu0 0.0
    %1216 = vmatpush1.msra.mxu0 %v795
    %1217 = vmatprep.subr.mxu0 0.0
    %1218 = vmatpush1.msra.mxu0 %v796
    %1219 = vmatprep.subr.mxu0 0.0
    %1220 = vmatpush1.msra.mxu0 %v797
    %1221 = vmatprep.subr.mxu0 0.0
    %1222 = vmatpush1.msra.mxu0 %v798
    %1223 = vmatprep.subr.mxu0 0.0
    %1224 = vmatpush1.msra.mxu0 0.0
    %1225 = vmatprep.subr.mxu0 0.0
    %1226 = vmatpush1.msra.mxu0 0.0
    %1227 = vmatprep.subr.mxu0 0.0
    %1228 = vmatpush1.msra.mxu0 0.0
    %1229 = vmatprep.subr.mxu0 0.0
    %1230 = vmatpush1.msra.mxu0 0.0
    %1231 = vmatprep.subr.mxu0 0.0
    %1232 = vmatpush1.msra.mxu0 0.0
    %1233 = vmatprep.subr.mxu0 0.0
    %1234 = vmatpush1.msra.mxu0 0.0
    %1235 = vmatprep.subr.mxu0 0.0
    %1236 = vmatpush1.msra.mxu0 0.0
    %1237 = vmatprep.subr.mxu0 0.0
    %1238 = vmatpush1.msra.mxu0 0.0
    %1239 = vmatprep.subr.mxu0 0.0
    %1240 = vmatpush1.msra.mxu0 0.0
    %1241 = vmatprep.subr.mxu0 0.0
    %1242 = vmatpush1.msra.mxu0 0.0
    %1243 = vmatprep.subr.mxu0 0.0
    %1244 = vmatpush1.msra.mxu0 0.0
    %1245 = vmatprep.subr.mxu0 0.0
    %1246 = vmatpush1.msra.mxu0 0.0
    %1247 = vmatprep.subr.mxu0 0.0
    %1248 = vmatpush1.msra.mxu0 0.0
    %1249 = vmatprep.subr.mxu0 0.0
    %1250 = vmatpush1.msra.mxu0 0.0
    %1251 = vmatprep.subr.mxu0 0.0
    %1252 = vmatpush1.msra.mxu0 0.0
    %1253 = vmatprep.subr.mxu0 0.0
    %1254 = vmatpush1.msra.mxu0 0.0
    %1255 = vmatprep.subr.mxu0 0.0
    %1256 = vmatpush1.msra.mxu0 0.0
    %1257 = vmatprep.subr.mxu0 0.0
    %1258 = vmatpush1.msra.mxu0 0.0
    %1259 = vmatprep.subr.mxu0 0.0
    %1260 = vmatpush1.msra.mxu0 0.0
    %1261 = vmatprep.subr.mxu0 0.0
    %1262 = vmatpush1.msra.mxu0 0.0
    %1263 = vmatprep.subr.mxu0 0.0
    %1264 = vmatpush1.msra.mxu0 0.0
    %1265 = vmatprep.subr.mxu0 0.0
    %1266 = vmatpush1.msra.mxu0 0.0
    %1267 = vmatprep.subr.mxu0 0.0
    %1268 = vmatpush1.msra.mxu0 0.0
    %1269 = vmatprep.subr.mxu0 0.0
    %1270 = vmatpush1.msra.mxu0 0.0
    %1271 = vmatprep.subr.mxu0 0.0
    %1272 = vmatpush1.msra.mxu0 0.0
    %1273 = vmatprep.subr.mxu0 0.0
    %1274 = vmatpush1.msra.mxu0 0.0
    %1275 = vmatprep.subr.mxu0 0.0
    %1276 = vmatpush1.msra.mxu0 0.0
    %1277 = vmatprep.subr.mxu0 0.0
    %1278 = vmatpush1.msra.mxu0 0.0
    %1279 = vmatprep.mubr.f32.mxu0 0.0
    %1280 = vmatmul.mubr.f32.gmra.mrb[0].mxu0 %v1213
    %v1281 = vpop.f32.mrb[0].mxu0
    %v1282 = vadd.f32 0.0, %v1281
    %v1283 = vpop.f32.mrb[0].mxu0
    %1284 = vdwg.mxu0
    %v1285 = vadd.f32 %v1005, %v1282
    %v1286 = vxor.u32 %v1285, 2147483648
    %v1287 = vmul.f32 %v1286, 1.442695
    %v1288 = vpow.pop %v1287
    %v1289 = vadd.f32 %v1288, 1.0
    %v1290 = vrcp.pop %v1289
    %v1291 = vmul.f32 1.0, %v1290
    %v1292 = vtanh.pop %v1285
    %v1293 = vmul.f32 %v1291, %v1203
    %1295 = vrot.lane.b32.xlu0 %v1292, 64
    %v1296 = vpop.permute.xlu0 %1295
    %v1298 = vmul.f32 %v1291, %v1296
    %1300 = vrot.lane.b32.xlu0 %v1298, 32
    %v1301 = vpop.permute.xlu0 %1300
    %v1303 = vadd.f32 %v1293, %v1301
    %v1304 = vtanh.pop %v1303
    %1306 = vrot.lane.b32.xlu0 %v1304, 64
    %v1307 = vpop.permute.xlu0 %1306
    %v1309 = vmul.f32 %v1291, %v1307
    %1311 = vrot.lane.b32.xlu0 %v1309, 32
    %v1312 = vpop.permute.xlu0 %1311
    %v1313 = vsel %vm1007, %v1312, 0
    %1315 = vmatprep.subr.mxu0 0.0
    %1316 = vmatpush1.msra.mxu0 %v795
    %1317 = vmatprep.subr.mxu0 0.0
    %1318 = vmatpush1.msra.mxu0 %v796
    %1319 = vmatprep.subr.mxu0 0.0
    %1320 = vmatpush1.msra.mxu0 %v797
    %1321 = vmatprep.subr.mxu0 0.0
    %1322 = vmatpush1.msra.mxu0 %v798
    %1323 = vmatprep.subr.mxu0 0.0
    %1324 = vmatpush1.msra.mxu0 0.0
    %1325 = vmatprep.subr.mxu0 0.0
    %1326 = vmatpush1.msra.mxu0 0.0
    %1327 = vmatprep.subr.mxu0 0.0
    %1328 = vmatpush1.msra.mxu0 0.0
    %1329 = vmatprep.subr.mxu0 0.0
    %1330 = vmatpush1.msra.mxu0 0.0
    %1331 = vmatprep.subr.mxu0 0.0
    %1332 = vmatpush1.msra.mxu0 0.0
    %1333 = vmatprep.subr.mxu0 0.0
    %1334 = vmatpush1.msra.mxu0 0.0
    %1335 = vmatprep.subr.mxu0 0.0
    %1336 = vmatpush1.msra.mxu0 0.0
    %1337 = vmatprep.subr.mxu0 0.0
    %1338 = vmatpush1.msra.mxu0 0.0
    %1339 = vmatprep.subr.mxu0 0.0
    %1340 = vmatpush1.msra.mxu0 0.0
    %1341 = vmatprep.subr.mxu0 0.0
    %1342 = vmatpush1.msra.mxu0 0.0
    %1343 = vmatprep.subr.mxu0 0.0
    %1344 = vmatpush1.msra.mxu0 0.0
    %1345 = vmatprep.subr.mxu0 0.0
    %1346 = vmatpush1.msra.mxu0 0.0
    %1347 = vmatprep.subr.mxu0 0.0
    %1348 = vmatpush1.msra.mxu0 0.0
    %1349 = vmatprep.subr.mxu0 0.0
    %1350 = vmatpush1.msra.mxu0 0.0
    %1351 = vmatprep.subr.mxu0 0.0
    %1352 = vmatpush1.msra.mxu0 0.0
    %1353 = vmatprep.subr.mxu0 0.0
    %1354 = vmatpush1.msra.mxu0 0.0
    %1355 = vmatprep.subr.mxu0 0.0
    %1356 = vmatpush1.msra.mxu0 0.0
    %1357 = vmatprep.subr.mxu0 0.0
    %1358 = vmatpush1.msra.mxu0 0.0
    %1359 = vmatprep.subr.mxu0 0.0
    %1360 = vmatpush1.msra.mxu0 0.0
    %1361 = vmatprep.subr.mxu0 0.0
    %1362 = vmatpush1.msra.mxu0 0.0
    %1363 = vmatprep.subr.mxu0 0.0
    %1364 = vmatpush1.msra.mxu0 0.0
    %1365 = vmatprep.subr.mxu0 0.0
    %1366 = vmatpush1.msra.mxu0 0.0
    %1367 = vmatprep.subr.mxu0 0.0
    %1368 = vmatpush1.msra.mxu0 0.0
    %1369 = vmatprep.subr.mxu0 0.0
    %1370 = vmatpush1.msra.mxu0 0.0
    %1371 = vmatprep.subr.mxu0 0.0
    %1372 = vmatpush1.msra.mxu0 0.0
    %1373 = vmatprep.subr.mxu0 0.0
    %1374 = vmatpush1.msra.mxu0 0.0
    %1375 = vmatprep.subr.mxu0 0.0
    %1376 = vmatpush1.msra.mxu0 0.0
    %1377 = vmatprep.subr.mxu0 0.0
    %1378 = vmatpush1.msra.mxu0 0.0
    %1379 = vmatprep.mubr.f32.mxu0 0.0
    %1380 = vmatmul.mubr.f32.gmra.mrb[0].mxu0 %v1313
    %v1381 = vpop.f32.mrb[0].mxu0
    %v1382 = vadd.f32 0.0, %v1381
    %v1383 = vpop.f32.mrb[0].mxu0
    %1384 = vdwg.mxu0
    %v1385 = vadd.f32 %v1006, %v1382
    %v1386 = vxor.u32 %v1385, 2147483648
    %v1387 = vmul.f32 %v1386, 1.442695
    %v1388 = vpow.pop %v1387
    %v1389 = vadd.f32 %v1388, 1.0
    %v1390 = vrcp.pop %v1389
    %v1391 = vmul.f32 1.0, %v1390
    %v1392 = vtanh.pop %v1385
    %v1393 = vmul.f32 %v1391, %v1303
    %1395 = vrot.lane.b32.xlu0 %v1392, 64
    %v1396 = vpop.permute.xlu0 %1395
    %v1398 = vmul.f32 %v1391, %v1396
    %1400 = vrot.lane.b32.xlu0 %v1398, 32
    %v1401 = vpop.permute.xlu0 %1400
    %v1403 = vadd.f32 %v1393, %v1401
    %v1404 = vtanh.pop %v1403
    %1406 = vrot.lane.b32.xlu0 %v1404, 64
    %v1407 = vpop.permute.xlu0 %1406
    %v1409 = vmul.f32 %v1391, %v1407
    %1411 = vrot.lane.b32.xlu0 %v1209, 64
    %v1412 = vpop.permute.xlu0 %1411
    %1414 = vrot.lane.b32.xlu0 %v1309, 96
    %v1415 = vpop.permute.xlu0 %1414
    %v1417 = vsel %vm1007, %v1112, %v1412
    %vm1418 = vcmask 523264
    %v1419 = vsel %vm1418, %v1417, %v1415
    %vm1420 = vcmask 785408
    %v1421 = vsel %vm1420, %v1419, %v1409
    %s1422 = scalar_lea.vmem %s9, %s997
    %1423 = vst [vmem:[%s1422] sm:$0xff] %v1421
    %1425 = vrot.lane.b32.xlu0 %v1409, 32
    %v1426 = vpop.permute.xlu0 %1425
    %1429 = vrot.lane.b32.xlu0 %v1403, 96
    %v1430 = vpop.permute.xlu0 %1429
  $region49: #{decoder_forward.1} parent=0 // loop_footer
    %s994 = sadd.s32 1, %s990
  $region50: #{decoder_forward.1} parent=0 // loop_footer_branch
    %989 = sbr.rel target = $region46
  $region51: #{decoder_forward.1} parent=0 // loop_exit
    _
  // Predicated region
  $region52: #{decoder_forward.1} parent=0 // pred_check
    _
  $region53: #{decoder_forward.1} parent=0 // pred_check_branch
    %1433 = sbr.rel (0) target = $region55
  $region54: #{decoder_forward.1} parent=0 // pred_region
    _
  $region55: #{decoder_forward.1} parent=0 // pred_fallthru
    _
  // Predicated region
  $region56: #{decoder_forward.1} parent=0 // pred_check
    _
  $region57: #{decoder_forward.1} parent=0 // pred_check_branch
    %1435 = sbr.rel (0) target = $region59
  $region58: #{decoder_forward.1} parent=0 // pred_region
    _
  $region59: #{decoder_forward.1} parent=0 // pred_fallthru
    _

</llo_original>
